<compile_context>
chip_gen: v7x
topology: tpu7x:2x2x1
jax: 0.10.0
libtpu: 0.0.40
codegen_flags: <defaults>
</compile_context>

<pallas_src>
import functools

import jax
import jax.numpy as jnp
from jax import lax
from jax.experimental import pallas as pl
from jax.experimental.pallas import tpu as pltpu

_LANE = 128
_MAX_UNROLL_SEQ = 128  # full-unroll design; plenty for this module's batch=1 use


def _round_up(v, m):
    return ((v + m - 1) // m) * m


def _birnn_kernel(
    x_ref,        # (N, I)
    wih_f_ref,    # (I, Hp)   = W_ih_fwd^T, lane-padded
    whh_f_ref,    # (Hp, Hp)  = W_hh_fwd^T, lane-padded
    b_f_ref,      # (1, Hp)   = b_ih_fwd + b_hh_fwd, lane-padded
    wih_b_ref,    # (I, Hp)
    whh_b_ref,    # (Hp, Hp)
    b_b_ref,      # (1, Hp)
    wfc_f_ref,    # (Hp, Op)  = top half of W_fc^T (fwd features), padded
    wfc_b_ref,    # (Hp, Op)  = bottom half of W_fc^T (bwd features), padded
    bfc_ref,      # (1, Op)
    y_ref,        # (N, Op)   output (lane-dense)
    xf_scr,       # (N, Hp)   fwd input projections
    xb_scr,       # (N, Hp)   bwd input projections
    hf_scr,       # (N, Hp)   fwd hidden states
    hb_scr,       # (N, Hp)   bwd hidden states
):
    N = x_ref.shape[0]
    Hp = whh_f_ref.shape[0]

    x = x_ref[...]

    # Input projections for both directions: two big MXU matmuls, biases folded.
    xf_scr[...] = (
        jnp.dot(x, wih_f_ref[...], preferred_element_type=jnp.float32) + b_f_ref[...]
    )
    xb_scr[...] = (
        jnp.dot(x, wih_b_ref[...], preferred_element_type=jnp.float32) + b_b_ref[...]
    )

    whh_f = whh_f_ref[...]
    whh_b = whh_b_ref[...]

    h_f = jnp.zeros((1, Hp), jnp.float32)   # carries live in vregs
    h_b = jnp.zeros((1, Hp), jnp.float32)

    # Fused, fully-unrolled recurrence: step t advances the forward chain at
    # position t AND the backward chain at position N-1-t.  The two chains are
    # independent, so their MXU round-trips and tanh (EUP) latencies overlap.
    # All indices are static Python ints -> unmasked, statically-addressed
    # loads/stores; the scratch writes are off the serial dependency chain.
    for t in range(N):
        s = N - 1 - t
        pre_f = xf_scr[pl.ds(t, 1), :] + jnp.dot(
            h_f, whh_f, preferred_element_type=jnp.float32
        )
        pre_b = xb_scr[pl.ds(s, 1), :] + jnp.dot(
            h_b, whh_b, preferred_element_type=jnp.float32
        )
        h_f = jnp.tanh(pre_f)
        h_b = jnp.tanh(pre_b)
        hf_scr[pl.ds(t, 1), :] = h_f
        hb_scr[pl.ds(s, 1), :] = h_b

    # Split FC head (no (N, 2H) concat / relayout): two lane-dense matmuls
    # accumulated in f32, plus bias, stored as one unmasked (N, Op) slab.
    y_ref[...] = (
        jnp.dot(hf_scr[...], wfc_f_ref[...], preferred_element_type=jnp.float32)
        + jnp.dot(hb_scr[...], wfc_b_ref[...], preferred_element_type=jnp.float32)
        + bfc_ref[...]
    )


def _full_spec(shape):
    # Single-block (no grid) spec: the whole array lives in VMEM.
    return pl.BlockSpec(shape, lambda: tuple(0 for _ in shape))


def prepare_params(params):
    """One-time host-side weight prep (hoisted out of the per-call path):
    transpose, fold biases, split the FC head, and zero-pad H and O to the
    128-lane width so every kernel tile is lane-dense."""
    H, I = params["wih_f"].shape
    O = params["wfc"].shape[0]
    Hp = _round_up(H, _LANE)
    Op = _round_up(O, _LANE)

    def pad2(a, rows, cols):
        return jnp.pad(a, ((0, rows - a.shape[0]), (0, cols - a.shape[1])))

    wfc_t = params["wfc"].T  # (2H, O)
    return {
        "wih_f": pad2(params["wih_f"].T, I, Hp),
        "whh_f": pad2(params["whh_f"].T, Hp, Hp),
        "b_f": pad2((params["bih_f"] + params["bhh_f"]).reshape(1, H), 1, Hp),
        "wih_b": pad2(params["wih_b"].T, I, Hp),
        "whh_b": pad2(params["whh_b"].T, Hp, Hp),
        "b_b": pad2((params["bih_b"] + params["bhh_b"]).reshape(1, H), 1, Hp),
        "wfc_f": pad2(wfc_t[:H], Hp, Op),
        "wfc_b": pad2(wfc_t[H:], Hp, Op),
        "bfc": pad2(params["bfc"].reshape(1, O), 1, Op),
    }


@functools.partial(jax.jit, static_argnames=("output_size",))
def birnn_forward(x, prepped, *, output_size):
    """x: (N, input_size) f32, prepped: prepare_params(params) -> (N*output_size,) f32."""
    N, _ = x.shape
    Hp = prepped["whh_f"].shape[0]
    Op = prepped["wfc_f"].shape[1]
    if N > _MAX_UNROLL_SEQ:
        raise ValueError(f"fully-unrolled kernel supports seq_len <= {_MAX_UNROLL_SEQ}")

    operands = (
        x,
        prepped["wih_f"], prepped["whh_f"], prepped["b_f"],
        prepped["wih_b"], prepped["whh_b"], prepped["b_b"],
        prepped["wfc_f"], prepped["wfc_b"], prepped["bfc"],
    )

    y_pad = pl.pallas_call(
        _birnn_kernel,
        out_shape=jax.ShapeDtypeStruct((N, Op), jnp.float32),
        in_specs=[_full_spec(op.shape) for op in operands],
        out_specs=_full_spec((N, Op)),
        scratch_shapes=[
            pltpu.VMEM((N, Hp), jnp.float32),  # xf_scr
            pltpu.VMEM((N, Hp), jnp.float32),  # xb_scr
            pltpu.VMEM((N, Hp), jnp.float32),  # hf_scr
            pltpu.VMEM((N, Hp), jnp.float32),  # hb_scr
        ],
    )(*operands)

    # Strip the lane padding of the output head and flatten, as in the module.
    return y_pad[:, :output_size].reshape(-1)


def birnn_reference(x, params):
    """Pure-JAX reference of the same math (for correctness check)."""
    N, _ = x.shape
    H = params["whh_f"].shape[0]

    def run_dir(wih, whh, bih, bhh, reverse):
        xs = x[::-1] if reverse else x
        xproj = xs @ wih.T + bih + bhh

        def step(h, xp):
            h_new = jnp.tanh(xp + h @ whh.T)
            return h_new, h_new

        _, hs = lax.scan(step, jnp.zeros((H,), jnp.float32), xproj)
        return hs[::-1] if reverse else hs

    hf = run_dir(params["wih_f"], params["whh_f"], params["bih_f"], params["bhh_f"], False)
    hb = run_dir(params["wih_b"], params["whh_b"], params["bih_b"], params["bhh_b"], True)
    out = jnp.concatenate([hf, hb], axis=-1)
    y = out @ params["wfc"].T + params["bfc"]
    return y.reshape(-1)


def init_params(key, input_size, hidden_size, output_size):
    # Deterministic init mimicking PyTorch's uniform(-1/sqrt(H), 1/sqrt(H)).
    ks = jax.random.split(key, 10)
    bound = 1.0 / jnp.sqrt(hidden_size)
    bfc_bound = 1.0 / jnp.sqrt(2 * hidden_size)
    u = lambda k, shape, b: jax.random.uniform(k, shape, jnp.float32, -b, b)
    return {
        "wih_f": u(ks[0], (hidden_size, input_size), bound),
        "whh_f": u(ks[1], (hidden_size, hidden_size), bound),
        "bih_f": u(ks[2], (hidden_size,), bound),
        "bhh_f": u(ks[3], (hidden_size,), bound),
        "wih_b": u(ks[4], (hidden_size, input_size), bound),
        "whh_b": u(ks[5], (hidden_size, hidden_size), bound),
        "bih_b": u(ks[6], (hidden_size,), bound),
        "bhh_b": u(ks[7], (hidden_size,), bound),
        "wfc": u(ks[8], (output_size, 2 * hidden_size), bfc_bound),
        "bfc": u(ks[9], (output_size,), bfc_bound),
    }


if __name__ == "__main__":
    INPUT_SIZE = 16
    HIDDEN_SIZE = 32
    OUTPUT_SIZE = 4
    SEQ = 8  # x.size(0) -> sequence length (batch=1)

    key = jax.random.PRNGKey(0)
    k_x, k_p = jax.random.split(key)
    x = jax.random.normal(k_x, (SEQ, INPUT_SIZE), jnp.float32)
    params = init_params(k_p, INPUT_SIZE, HIDDEN_SIZE, OUTPUT_SIZE)

    prepped = prepare_params(params)  # one-time weight prep (outside the hot path)

    y = birnn_forward(x, prepped, output_size=OUTPUT_SIZE)
    y = jax.block_until_ready(y)

    y_ref = birnn_reference(x, params)
    assert y.shape == (SEQ * OUTPUT_SIZE,), y.shape
    assert jnp.allclose(y, y_ref, atol=1e-5, rtol=1e-5), (
        f"max abs err {jnp.max(jnp.abs(y - y_ref))}"
    )
    print("KERNEL_OK")
</pallas_src>

<mosaic_0001>
module attributes {stable_mosaic.version = 11 : i64} {
  func.func @_birnn_kernel(%arg0: memref<8x16xf32, #tpu.memory_space<vmem>>, %arg1: memref<16x128xf32, #tpu.memory_space<vmem>>, %arg2: memref<128x128xf32, #tpu.memory_space<vmem>>, %arg3: memref<1x128xf32, #tpu.memory_space<vmem>>, %arg4: memref<16x128xf32, #tpu.memory_space<vmem>>, %arg5: memref<128x128xf32, #tpu.memory_space<vmem>>, %arg6: memref<1x128xf32, #tpu.memory_space<vmem>>, %arg7: memref<128x128xf32, #tpu.memory_space<vmem>>, %arg8: memref<128x128xf32, #tpu.memory_space<vmem>>, %arg9: memref<1x128xf32, #tpu.memory_space<vmem>>, %arg10: memref<8x128xf32, #tpu.memory_space<vmem>>, %arg11: memref<8x128xf32, #tpu.memory_space<vmem>>, %arg12: memref<8x128xf32, #tpu.memory_space<vmem>>, %arg13: memref<8x128xf32, #tpu.memory_space<vmem>>, %arg14: memref<8x128xf32, #tpu.memory_space<vmem>>) attributes {dimension_semantics = [], scalar_prefetch = 0 : i64, scratch_operands = 4 : i64, tpu.core_type = #tpu.core_type<tc>} {
    %c0 = arith.constant 0 : index
    %c0_0 = arith.constant 0 : index
    %0 = vector.load %arg0[%c0, %c0_0] : memref<8x16xf32, #tpu.memory_space<vmem>>, vector<8x16xf32>
    %c0_1 = arith.constant 0 : index
    %c0_2 = arith.constant 0 : index
    %1 = vector.load %arg1[%c0_1, %c0_2] : memref<16x128xf32, #tpu.memory_space<vmem>>, vector<16x128xf32>
    %cst = arith.constant dense<0.000000e+00> : vector<8x128xf32>
    %2 = tpu.matmul %0, %1, %cst {dimension_numbers = #tpu.dot_dimension_numbers<[1], [0], [0], [1], [0, 0, 1, 1], [], []>} : vector<8x16xf32>, vector<16x128xf32>, vector<8x128xf32> -> vector<8x128xf32>
    %c0_3 = arith.constant 0 : index
    %c0_4 = arith.constant 0 : index
    %3 = vector.load %arg3[%c0_3, %c0_4] : memref<1x128xf32, #tpu.memory_space<vmem>>, vector<1x128xf32>
    %4 = vector.broadcast %3 : vector<1x128xf32> to vector<8x128xf32>
    %5 = arith.addf %2, %4 : vector<8x128xf32>
    %c0_5 = arith.constant 0 : index
    %c0_6 = arith.constant 0 : index
    %6 = vector.load %arg11[%c0_5, %c0_6] : memref<8x128xf32, #tpu.memory_space<vmem>>, vector<8x128xf32>
    tpu.vector_store %arg11[%c0_5, %c0_6], %5 {strides = array<i32>} : memref<8x128xf32, #tpu.memory_space<vmem>>, vector<8x128xf32>,
    %c0_7 = arith.constant 0 : index
    %c0_8 = arith.constant 0 : index
    %7 = vector.load %arg4[%c0_7, %c0_8] : memref<16x128xf32, #tpu.memory_space<vmem>>, vector<16x128xf32>
    %cst_9 = arith.constant dense<0.000000e+00> : vector<8x128xf32>
    %8 = tpu.matmul %0, %7, %cst_9 {dimension_numbers = #tpu.dot_dimension_numbers<[1], [0], [0], [1], [0, 0, 1, 1], [], []>} : vector<8x16xf32>, vector<16x128xf32>, vector<8x128xf32> -> vector<8x128xf32>
    %c0_10 = arith.constant 0 : index
    %c0_11 = arith.constant 0 : index
    %9 = vector.load %arg6[%c0_10, %c0_11] : memref<1x128xf32, #tpu.memory_space<vmem>>, vector<1x128xf32>
    %10 = vector.broadcast %9 : vector<1x128xf32> to vector<8x128xf32>
    %11 = arith.addf %8, %10 : vector<8x128xf32>
    %c0_12 = arith.constant 0 : index
    %c0_13 = arith.constant 0 : index
    %12 = vector.load %arg12[%c0_12, %c0_13] : memref<8x128xf32, #tpu.memory_space<vmem>>, vector<8x128xf32>
    tpu.vector_store %arg12[%c0_12, %c0_13], %11 {strides = array<i32>} : memref<8x128xf32, #tpu.memory_space<vmem>>, vector<8x128xf32>,
    %c0_14 = arith.constant 0 : index
    %c0_15 = arith.constant 0 : index
    %13 = vector.load %arg2[%c0_14, %c0_15] : memref<128x128xf32, #tpu.memory_space<vmem>>, vector<128x128xf32>
    %c0_16 = arith.constant 0 : index
    %c0_17 = arith.constant 0 : index
    %14 = vector.load %arg5[%c0_16, %c0_17] : memref<128x128xf32, #tpu.memory_space<vmem>>, vector<128x128xf32>
    %cst_18 = arith.constant 0.000000e+00 : f32
    %15 = vector.broadcast %cst_18 : f32 to vector<1x128xf32>
    %cst_19 = arith.constant 0.000000e+00 : f32
    %16 = vector.broadcast %cst_19 : f32 to vector<1x128xf32>
    %c0_20 = arith.constant 0 : index
    %c0_21 = arith.constant 0 : index
    %17 = vector.load %arg11[%c0_20, %c0_21] : memref<8x128xf32, #tpu.memory_space<vmem>>, vector<1x128xf32>
    %cst_22 = arith.constant dense<0.000000e+00> : vector<1x128xf32>
    %18 = tpu.matmul %15, %13, %cst_22 {dimension_numbers = #tpu.dot_dimension_numbers<[1], [0], [0], [1], [0, 0, 1, 1], [], []>} : vector<1x128xf32>, vector<128x128xf32>, vector<1x128xf32> -> vector<1x128xf32>
    %19 = arith.addf %17, %18 : vector<1x128xf32>
    %c7 = arith.constant 7 : index
    %c0_23 = arith.constant 0 : index
    %20 = vector.load %arg12[%c7, %c0_23] : memref<8x128xf32, #tpu.memory_space<vmem>>, vector<1x128xf32>
    %cst_24 = arith.constant dense<0.000000e+00> : vector<1x128xf32>
    %21 = tpu.matmul %16, %14, %cst_24 {dimension_numbers = #tpu.dot_dimension_numbers<[1], [0], [0], [1], [0, 0, 1, 1], [], []>} : vector<1x128xf32>, vector<128x128xf32>, vector<1x128xf32> -> vector<1x128xf32>
    %22 = arith.addf %20, %21 : vector<1x128xf32>
    %23 = math.tanh %19 : vector<1x128xf32>
    %24 = math.tanh %22 : vector<1x128xf32>
    %c0_25 = arith.constant 0 : index
    %c0_26 = arith.constant 0 : index
    %25 = vector.load %arg13[%c0_25, %c0_26] : memref<8x128xf32, #tpu.memory_space<vmem>>, vector<1x128xf32>
    tpu.vector_store %arg13[%c0_25, %c0_26], %23 {strides = array<i32>} : memref<8x128xf32, #tpu.memory_space<vmem>>, vector<1x128xf32>,
    %c7_27 = arith.constant 7 : index
    %c0_28 = arith.constant 0 : index
    %26 = vector.load %arg14[%c7_27, %c0_28] : memref<8x128xf32, #tpu.memory_space<vmem>>, vector<1x128xf32>
    tpu.vector_store %arg14[%c7_27, %c0_28], %24 {strides = array<i32>} : memref<8x128xf32, #tpu.memory_space<vmem>>, vector<1x128xf32>,
    %c1 = arith.constant 1 : index
    %c0_29 = arith.constant 0 : index
    %27 = vector.load %arg11[%c1, %c0_29] : memref<8x128xf32, #tpu.memory_space<vmem>>, vector<1x128xf32>
    %cst_30 = arith.constant dense<0.000000e+00> : vector<1x128xf32>
    %28 = tpu.matmul %23, %13, %cst_30 {dimension_numbers = #tpu.dot_dimension_numbers<[1], [0], [0], [1], [0, 0, 1, 1], [], []>} : vector<1x128xf32>, vector<128x128xf32>, vector<1x128xf32> -> vector<1x128xf32>
    %29 = arith.addf %27, %28 : vector<1x128xf32>
    %c6 = arith.constant 6 : index
    %c0_31 = arith.constant 0 : index
    %30 = vector.load %arg12[%c6, %c0_31] : memref<8x128xf32, #tpu.memory_space<vmem>>, vector<1x128xf32>
    %cst_32 = arith.constant dense<0.000000e+00> : vector<1x128xf32>
    %31 = tpu.matmul %24, %14, %cst_32 {dimension_numbers = #tpu.dot_dimension_numbers<[1], [0], [0], [1], [0, 0, 1, 1], [], []>} : vector<1x128xf32>, vector<128x128xf32>, vector<1x128xf32> -> vector<1x128xf32>
    %32 = arith.addf %30, %31 : vector<1x128xf32>
    %33 = math.tanh %29 : vector<1x128xf32>
    %34 = math.tanh %32 : vector<1x128xf32>
    %c1_33 = arith.constant 1 : index
    %c0_34 = arith.constant 0 : index
    %35 = vector.load %arg13[%c1_33, %c0_34] : memref<8x128xf32, #tpu.memory_space<vmem>>, vector<1x128xf32>
    tpu.vector_store %arg13[%c1_33, %c0_34], %33 {strides = array<i32>} : memref<8x128xf32, #tpu.memory_space<vmem>>, vector<1x128xf32>,
    %c6_35 = arith.constant 6 : index
    %c0_36 = arith.constant 0 : index
    %36 = vector.load %arg14[%c6_35, %c0_36] : memref<8x128xf32, #tpu.memory_space<vmem>>, vector<1x128xf32>
    tpu.vector_store %arg14[%c6_35, %c0_36], %34 {strides = array<i32>} : memref<8x128xf32, #tpu.memory_space<vmem>>, vector<1x128xf32>,
    %c2 = arith.constant 2 : index
    %c0_37 = arith.constant 0 : index
    %37 = vector.load %arg11[%c2, %c0_37] : memref<8x128xf32, #tpu.memory_space<vmem>>, vector<1x128xf32>
    %cst_38 = arith.constant dense<0.000000e+00> : vector<1x128xf32>
    %38 = tpu.matmul %33, %13, %cst_38 {dimension_numbers = #tpu.dot_dimension_numbers<[1], [0], [0], [1], [0, 0, 1, 1], [], []>} : vector<1x128xf32>, vector<128x128xf32>, vector<1x128xf32> -> vector<1x128xf32>
    %39 = arith.addf %37, %38 : vector<1x128xf32>
    %c5 = arith.constant 5 : index
    %c0_39 = arith.constant 0 : index
    %40 = vector.load %arg12[%c5, %c0_39] : memref<8x128xf32, #tpu.memory_space<vmem>>, vector<1x128xf32>
    %cst_40 = arith.constant dense<0.000000e+00> : vector<1x128xf32>
    %41 = tpu.matmul %34, %14, %cst_40 {dimension_numbers = #tpu.dot_dimension_numbers<[1], [0], [0], [1], [0, 0, 1, 1], [], []>} : vector<1x128xf32>, vector<128x128xf32>, vector<1x128xf32> -> vector<1x128xf32>
    %42 = arith.addf %40, %41 : vector<1x128xf32>
    %43 = math.tanh %39 : vector<1x128xf32>
    %44 = math.tanh %42 : vector<1x128xf32>
    %c2_41 = arith.constant 2 : index
    %c0_42 = arith.constant 0 : index
    %45 = vector.load %arg13[%c2_41, %c0_42] : memref<8x128xf32, #tpu.memory_space<vmem>>, vector<1x128xf32>
    tpu.vector_store %arg13[%c2_41, %c0_42], %43 {strides = array<i32>} : memref<8x128xf32, #tpu.memory_space<vmem>>, vector<1x128xf32>,
    %c5_43 = arith.constant 5 : index
    %c0_44 = arith.constant 0 : index
    %46 = vector.load %arg14[%c5_43, %c0_44] : memref<8x128xf32, #tpu.memory_space<vmem>>, vector<1x128xf32>
    tpu.vector_store %arg14[%c5_43, %c0_44], %44 {strides = array<i32>} : memref<8x128xf32, #tpu.memory_space<vmem>>, vector<1x128xf32>,
    %c3 = arith.constant 3 : index
    %c0_45 = arith.constant 0 : index
    %47 = vector.load %arg11[%c3, %c0_45] : memref<8x128xf32, #tpu.memory_space<vmem>>, vector<1x128xf32>
    %cst_46 = arith.constant dense<0.000000e+00> : vector<1x128xf32>
    %48 = tpu.matmul %43, %13, %cst_46 {dimension_numbers = #tpu.dot_dimension_numbers<[1], [0], [0], [1], [0, 0, 1, 1], [], []>} : vector<1x128xf32>, vector<128x128xf32>, vector<1x128xf32> -> vector<1x128xf32>
    %49 = arith.addf %47, %48 : vector<1x128xf32>
    %c4 = arith.constant 4 : index
    %c0_47 = arith.constant 0 : index
    %50 = vector.load %arg12[%c4, %c0_47] : memref<8x128xf32, #tpu.memory_space<vmem>>, vector<1x128xf32>
    %cst_48 = arith.constant dense<0.000000e+00> : vector<1x128xf32>
    %51 = tpu.matmul %44, %14, %cst_48 {dimension_numbers = #tpu.dot_dimension_numbers<[1], [0], [0], [1], [0, 0, 1, 1], [], []>} : vector<1x128xf32>, vector<128x128xf32>, vector<1x128xf32> -> vector<1x128xf32>
    %52 = arith.addf %50, %51 : vector<1x128xf32>
    %53 = math.tanh %49 : vector<1x128xf32>
    %54 = math.tanh %52 : vector<1x128xf32>
    %c3_49 = arith.constant 3 : index
    %c0_50 = arith.constant 0 : index
    %55 = vector.load %arg13[%c3_49, %c0_50] : memref<8x128xf32, #tpu.memory_space<vmem>>, vector<1x128xf32>
    tpu.vector_store %arg13[%c3_49, %c0_50], %53 {strides = array<i32>} : memref<8x128xf32, #tpu.memory_space<vmem>>, vector<1x128xf32>,
    %c4_51 = arith.constant 4 : index
    %c0_52 = arith.constant 0 : index
    %56 = vector.load %arg14[%c4_51, %c0_52] : memref<8x128xf32, #tpu.memory_space<vmem>>, vector<1x128xf32>
    tpu.vector_store %arg14[%c4_51, %c0_52], %54 {strides = array<i32>} : memref<8x128xf32, #tpu.memory_space<vmem>>, vector<1x128xf32>,
    %c4_53 = arith.constant 4 : index
    %c0_54 = arith.constant 0 : index
    %57 = vector.load %arg11[%c4_53, %c0_54] : memref<8x128xf32, #tpu.memory_space<vmem>>, vector<1x128xf32>
    %cst_55 = arith.constant dense<0.000000e+00> : vector<1x128xf32>
    %58 = tpu.matmul %53, %13, %cst_55 {dimension_numbers = #tpu.dot_dimension_numbers<[1], [0], [0], [1], [0, 0, 1, 1], [], []>} : vector<1x128xf32>, vector<128x128xf32>, vector<1x128xf32> -> vector<1x128xf32>
    %59 = arith.addf %57, %58 : vector<1x128xf32>
    %c3_56 = arith.constant 3 : index
    %c0_57 = arith.constant 0 : index
    %60 = vector.load %arg12[%c3_56, %c0_57] : memref<8x128xf32, #tpu.memory_space<vmem>>, vector<1x128xf32>
    %cst_58 = arith.constant dense<0.000000e+00> : vector<1x128xf32>
    %61 = tpu.matmul %54, %14, %cst_58 {dimension_numbers = #tpu.dot_dimension_numbers<[1], [0], [0], [1], [0, 0, 1, 1], [], []>} : vector<1x128xf32>, vector<128x128xf32>, vector<1x128xf32> -> vector<1x128xf32>
    %62 = arith.addf %60, %61 : vector<1x128xf32>
    %63 = math.tanh %59 : vector<1x128xf32>
    %64 = math.tanh %62 : vector<1x128xf32>
    %c4_59 = arith.constant 4 : index
    %c0_60 = arith.constant 0 : index
    %65 = vector.load %arg13[%c4_59, %c0_60] : memref<8x128xf32, #tpu.memory_space<vmem>>, vector<1x128xf32>
    tpu.vector_store %arg13[%c4_59, %c0_60], %63 {strides = array<i32>} : memref<8x128xf32, #tpu.memory_space<vmem>>, vector<1x128xf32>,
    %c3_61 = arith.constant 3 : index
    %c0_62 = arith.constant 0 : index
    %66 = vector.load %arg14[%c3_61, %c0_62] : memref<8x128xf32, #tpu.memory_space<vmem>>, vector<1x128xf32>
    tpu.vector_store %arg14[%c3_61, %c0_62], %64 {strides = array<i32>} : memref<8x128xf32, #tpu.memory_space<vmem>>, vector<1x128xf32>,
    %c5_63 = arith.constant 5 : index
    %c0_64 = arith.constant 0 : index
    %67 = vector.load %arg11[%c5_63, %c0_64] : memref<8x128xf32, #tpu.memory_space<vmem>>, vector<1x128xf32>
    %cst_65 = arith.constant dense<0.000000e+00> : vector<1x128xf32>
    %68 = tpu.matmul %63, %13, %cst_65 {dimension_numbers = #tpu.dot_dimension_numbers<[1], [0], [0], [1], [0, 0, 1, 1], [], []>} : vector<1x128xf32>, vector<128x128xf32>, vector<1x128xf32> -> vector<1x128xf32>
    %69 = arith.addf %67, %68 : vector<1x128xf32>
    %c2_66 = arith.constant 2 : index
    %c0_67 = arith.constant 0 : index
    %70 = vector.load %arg12[%c2_66, %c0_67] : memref<8x128xf32, #tpu.memory_space<vmem>>, vector<1x128xf32>
    %cst_68 = arith.constant dense<0.000000e+00> : vector<1x128xf32>
    %71 = tpu.matmul %64, %14, %cst_68 {dimension_numbers = #tpu.dot_dimension_numbers<[1], [0], [0], [1], [0, 0, 1, 1], [], []>} : vector<1x128xf32>, vector<128x128xf32>, vector<1x128xf32> -> vector<1x128xf32>
    %72 = arith.addf %70, %71 : vector<1x128xf32>
    %73 = math.tanh %69 : vector<1x128xf32>
    %74 = math.tanh %72 : vector<1x128xf32>
    %c5_69 = arith.constant 5 : index
    %c0_70 = arith.constant 0 : index
    %75 = vector.load %arg13[%c5_69, %c0_70] : memref<8x128xf32, #tpu.memory_space<vmem>>, vector<1x128xf32>
    tpu.vector_store %arg13[%c5_69, %c0_70], %73 {strides = array<i32>} : memref<8x128xf32, #tpu.memory_space<vmem>>, vector<1x128xf32>,
    %c2_71 = arith.constant 2 : index
    %c0_72 = arith.constant 0 : index
    %76 = vector.load %arg14[%c2_71, %c0_72] : memref<8x128xf32, #tpu.memory_space<vmem>>, vector<1x128xf32>
    tpu.vector_store %arg14[%c2_71, %c0_72], %74 {strides = array<i32>} : memref<8x128xf32, #tpu.memory_space<vmem>>, vector<1x128xf32>,
    %c6_73 = arith.constant 6 : index
    %c0_74 = arith.constant 0 : index
    %77 = vector.load %arg11[%c6_73, %c0_74] : memref<8x128xf32, #tpu.memory_space<vmem>>, vector<1x128xf32>
    %cst_75 = arith.constant dense<0.000000e+00> : vector<1x128xf32>
    %78 = tpu.matmul %73, %13, %cst_75 {dimension_numbers = #tpu.dot_dimension_numbers<[1], [0], [0], [1], [0, 0, 1, 1], [], []>} : vector<1x128xf32>, vector<128x128xf32>, vector<1x128xf32> -> vector<1x128xf32>
    %79 = arith.addf %77, %78 : vector<1x128xf32>
    %c1_76 = arith.constant 1 : index
    %c0_77 = arith.constant 0 : index
    %80 = vector.load %arg12[%c1_76, %c0_77] : memref<8x128xf32, #tpu.memory_space<vmem>>, vector<1x128xf32>
    %cst_78 = arith.constant dense<0.000000e+00> : vector<1x128xf32>
    %81 = tpu.matmul %74, %14, %cst_78 {dimension_numbers = #tpu.dot_dimension_numbers<[1], [0], [0], [1], [0, 0, 1, 1], [], []>} : vector<1x128xf32>, vector<128x128xf32>, vector<1x128xf32> -> vector<1x128xf32>
    %82 = arith.addf %80, %81 : vector<1x128xf32>
    %83 = math.tanh %79 : vector<1x128xf32>
    %84 = math.tanh %82 : vector<1x128xf32>
    %c6_79 = arith.constant 6 : index
    %c0_80 = arith.constant 0 : index
    %85 = vector.load %arg13[%c6_79, %c0_80] : memref<8x128xf32, #tpu.memory_space<vmem>>, vector<1x128xf32>
    tpu.vector_store %arg13[%c6_79, %c0_80], %83 {strides = array<i32>} : memref<8x128xf32, #tpu.memory_space<vmem>>, vector<1x128xf32>,
    %c1_81 = arith.constant 1 : index
    %c0_82 = arith.constant 0 : index
    %86 = vector.load %arg14[%c1_81, %c0_82] : memref<8x128xf32, #tpu.memory_space<vmem>>, vector<1x128xf32>
    tpu.vector_store %arg14[%c1_81, %c0_82], %84 {strides = array<i32>} : memref<8x128xf32, #tpu.memory_space<vmem>>, vector<1x128xf32>,
    %c7_83 = arith.constant 7 : index
    %c0_84 = arith.constant 0 : index
    %87 = vector.load %arg11[%c7_83, %c0_84] : memref<8x128xf32, #tpu.memory_space<vmem>>, vector<1x128xf32>
    %cst_85 = arith.constant dense<0.000000e+00> : vector<1x128xf32>
    %88 = tpu.matmul %83, %13, %cst_85 {dimension_numbers = #tpu.dot_dimension_numbers<[1], [0], [0], [1], [0, 0, 1, 1], [], []>} : vector<1x128xf32>, vector<128x128xf32>, vector<1x128xf32> -> vector<1x128xf32>
    %89 = arith.addf %87, %88 : vector<1x128xf32>
    %c0_86 = arith.constant 0 : index
    %c0_87 = arith.constant 0 : index
    %90 = vector.load %arg12[%c0_86, %c0_87] : memref<8x128xf32, #tpu.memory_space<vmem>>, vector<1x128xf32>
    %cst_88 = arith.constant dense<0.000000e+00> : vector<1x128xf32>
    %91 = tpu.matmul %84, %14, %cst_88 {dimension_numbers = #tpu.dot_dimension_numbers<[1], [0], [0], [1], [0, 0, 1, 1], [], []>} : vector<1x128xf32>, vector<128x128xf32>, vector<1x128xf32> -> vector<1x128xf32>
    %92 = arith.addf %90, %91 : vector<1x128xf32>
    %93 = math.tanh %89 : vector<1x128xf32>
    %94 = math.tanh %92 : vector<1x128xf32>
    %c7_89 = arith.constant 7 : index
    %c0_90 = arith.constant 0 : index
    %95 = vector.load %arg13[%c7_89, %c0_90] : memref<8x128xf32, #tpu.memory_space<vmem>>, vector<1x128xf32>
    tpu.vector_store %arg13[%c7_89, %c0_90], %93 {strides = array<i32>} : memref<8x128xf32, #tpu.memory_space<vmem>>, vector<1x128xf32>,
    %c0_91 = arith.constant 0 : index
    %c0_92 = arith.constant 0 : index
    %96 = vector.load %arg14[%c0_91, %c0_92] : memref<8x128xf32, #tpu.memory_space<vmem>>, vector<1x128xf32>
    tpu.vector_store %arg14[%c0_91, %c0_92], %94 {strides = array<i32>} : memref<8x128xf32, #tpu.memory_space<vmem>>, vector<1x128xf32>,
    %c0_93 = arith.constant 0 : index
    %c0_94 = arith.constant 0 : index
    %97 = vector.load %arg13[%c0_93, %c0_94] : memref<8x128xf32, #tpu.memory_space<vmem>>, vector<8x128xf32>
    %c0_95 = arith.constant 0 : index
    %c0_96 = arith.constant 0 : index
    %98 = vector.load %arg7[%c0_95, %c0_96] : memref<128x128xf32, #tpu.memory_space<vmem>>, vector<128x128xf32>
    %cst_97 = arith.constant dense<0.000000e+00> : vector<8x128xf32>
    %99 = tpu.matmul %97, %98, %cst_97 {dimension_numbers = #tpu.dot_dimension_numbers<[1], [0], [0], [1], [0, 0, 1, 1], [], []>} : vector<8x128xf32>, vector<128x128xf32>, vector<8x128xf32> -> vector<8x128xf32>
    %c0_98 = arith.constant 0 : index
    %c0_99 = arith.constant 0 : index
    %100 = vector.load %arg14[%c0_98, %c0_99] : memref<8x128xf32, #tpu.memory_space<vmem>>, vector<8x128xf32>
    %c0_100 = arith.constant 0 : index
    %c0_101 = arith.constant 0 : index
    %101 = vector.load %arg8[%c0_100, %c0_101] : memref<128x128xf32, #tpu.memory_space<vmem>>, vector<128x128xf32>
    %cst_102 = arith.constant dense<0.000000e+00> : vector<8x128xf32>
    %102 = tpu.matmul %100, %101, %cst_102 {dimension_numbers = #tpu.dot_dimension_numbers<[1], [0], [0], [1], [0, 0, 1, 1], [], []>} : vector<8x128xf32>, vector<128x128xf32>, vector<8x128xf32> -> vector<8x128xf32>
    %103 = arith.addf %99, %102 : vector<8x128xf32>
    %c0_103 = arith.constant 0 : index
    %c0_104 = arith.constant 0 : index
    %104 = vector.load %arg9[%c0_103, %c0_104] : memref<1x128xf32, #tpu.memory_space<vmem>>, vector<1x128xf32>
    %105 = vector.broadcast %104 : vector<1x128xf32> to vector<8x128xf32>
    %106 = arith.addf %103, %105 : vector<8x128xf32>
    %c0_105 = arith.constant 0 : index
    %c0_106 = arith.constant 0 : index
    %107 = vector.load %arg10[%c0_105, %c0_106] : memref<8x128xf32, #tpu.memory_space<vmem>>, vector<8x128xf32>
    tpu.vector_store %arg10[%c0_105, %c0_106], %106 {strides = array<i32>} : memref<8x128xf32, #tpu.memory_space<vmem>>, vector<8x128xf32>,
    return
  }
}

</mosaic_0001>

<llo_original>
// kernel: birnn_forward.1
$region0: #{birnn_forward.1}
  #allocation0 [shape = 'u32[]', space=smem, size = 0x4, offset = 0x4, fixed_abs, tag = 'smem constant byte address 0x4 - core index']
  #allocation1 [shape = 'u32[144,128]{1,0:T(1,128)}', space=vmem, size = 0x12000, scoped, tag = 'internal scratch']
  #allocation2 [shape = 'f32[8,128]{1,0:T(8,128)}', space=vmem, size = 0x1000, scoped, tag = 'scratch operand']
  #allocation3 [shape = 'f32[8,128]{1,0:T(8,128)}', space=vmem, size = 0x1000, scoped, tag = 'scratch operand']
  #allocation4 [shape = 'f32[8,128]{1,0:T(8,128)}', space=vmem, size = 0x1000, scoped, tag = 'scratch operand']
  #allocation5 [shape = 'f32[8,128]{1,0:T(8,128)}', space=vmem, size = 0x1000, scoped, tag = 'scratch operand']
  %s0 = inlined_call_operand.hbm [shape: f32[8,16], index: 0, kind: input, shape index: {}]
  %s1 = inlined_call_operand.vmem [shape: f32[16,128], index: 1, kind: input, shape index: {}]
  %s2 = inlined_call_operand.hbm [shape: f32[128,128], index: 2, kind: input, shape index: {}]
  %s3 = inlined_call_operand.vmem [shape: f32[1,128], index: 3, kind: input, shape index: {}]
  %s4 = inlined_call_operand.hbm [shape: f32[16,128], index: 4, kind: input, shape index: {}]
  %s5 = inlined_call_operand.hbm [shape: f32[128,128], index: 5, kind: input, shape index: {}]
  %s6 = inlined_call_operand.vmem [shape: f32[1,128], index: 6, kind: input, shape index: {}]
  %s7 = inlined_call_operand.hbm [shape: f32[128,128], index: 7, kind: input, shape index: {}]
  %s8 = inlined_call_operand.hbm [shape: f32[128,128], index: 8, kind: input, shape index: {}]
  %s9 = inlined_call_operand.vmem [shape: f32[1,128], index: 9, kind: input, shape index: {}]
  %s10 = inlined_call_operand.vmem [shape: f32[8,128], index: 10, kind: output, shape index: {}]
  %s11 = sld [smem:[#allocation0]]
  $region74: #{birnn_forward.1} parent=0
    _
  %s13 = ssub.s32 1, %s11
  %s14 = scalar_select 0, %s13, %s11
  $region1: #{birnn_forward.1} parent=0
    #allocation6 [shape = 'u8[4096]{0}', space=vmem, size = 0x1000, scoped, tag = 'input window, operand 0, single buffered']
    #allocation7 [shape = 's32[1]{0}', space=sflag, size = 0x4, scoped, tag = 'scoped memory for birnn_forward.1']
    #allocation8 [shape = 'u8[65536]{0}', space=vmem, size = 0x10000, scoped, tag = 'input window, operand 2, single buffered']
    #allocation9 [shape = 's32[1]{0}', space=sflag, size = 0x4, scoped, tag = 'scoped memory for birnn_forward.1']
    #allocation10 [shape = 'u8[8192]{0}', space=vmem, size = 0x2000, scoped, tag = 'input window, operand 4, single buffered']
    #allocation11 [shape = 'u8[65536]{0}', space=vmem, size = 0x10000, scoped, tag = 'input window, operand 5, single buffered']
    #allocation12 [shape = 's32[1]{0}', space=sflag, size = 0x4, scoped, tag = 'scoped memory for birnn_forward.1']
    #allocation13 [shape = 'u8[65536]{0}', space=vmem, size = 0x10000, scoped, tag = 'input window, operand 7, single buffered']
    #allocation14 [shape = 'u8[65536]{0}', space=vmem, size = 0x10000, scoped, tag = 'input window, operand 8, single buffered']
    #allocation15 [shape = 's32[1]{0}', space=sflag, size = 0x4, scoped, tag = 'scoped memory for birnn_forward.1']
    %15 = vsyncpa [#allocation7], 0
    %16 = vsyncpa [#allocation9], 0
    %17 = vsyncpa [#allocation12], 0
    %18 = vsyncpa [#allocation15], 0
    // Predicated region
    $region2: #{birnn_forward.1} parent=1 // pred_check
      _
    $region3: #{birnn_forward.1} parent=1 // pred_check_branch
      %20 = sbr.rel (0) target = $region5
    $region4: #{birnn_forward.1} parent=1 // pred_region
      %s22 = ssub.s32 128, 128
      %23 = vsyncadd [#allocation7], %s22
      %s25 = sshll.u32 [#allocation6], 4
      %s26 = int_to_ptr.vmem [resolvable:$true] %s25
      %28 = dma.hbm_to_vmem [thread:$0]  %s0, 128, %s26, [#allocation7]
    $region5: #{birnn_forward.1} parent=1 // pred_fallthru
      _
    // Predicated region
    $region6: #{birnn_forward.1} parent=1 // pred_check
      _
    $region7: #{birnn_forward.1} parent=1 // pred_check_branch
      %30 = sbr.rel (0) target = $region9
    $region8: #{birnn_forward.1} parent=1 // pred_region
      _
    $region9: #{birnn_forward.1} parent=1 // pred_fallthru
      _
    // Predicated region
    $region10: #{birnn_forward.1} parent=1 // pred_check
      _
    $region11: #{birnn_forward.1} parent=1 // pred_check_branch
      %32 = sbr.rel (0) target = $region13
    $region12: #{birnn_forward.1} parent=1 // pred_region
      %s34 = ssub.s32 2048, 2048
      %35 = vsyncadd [#allocation9], %s34
      %s36 = sshll.u32 [#allocation8], 4
      %s37 = int_to_ptr.vmem [resolvable:$true] %s36
      %42 = dma.hbm_to_vmem [thread:$0]  %s2, 2048, %s37, [#allocation9], 128, 128, 8
    $region13: #{birnn_forward.1} parent=1 // pred_fallthru
      _
    // Predicated region
    $region14: #{birnn_forward.1} parent=1 // pred_check
      _
    $region15: #{birnn_forward.1} parent=1 // pred_check_branch
      %44 = sbr.rel (0) target = $region17
    $region16: #{birnn_forward.1} parent=1 // pred_region
      _
    $region17: #{birnn_forward.1} parent=1 // pred_fallthru
      _
    // Predicated region
    $region18: #{birnn_forward.1} parent=1 // pred_check
      _
    $region19: #{birnn_forward.1} parent=1 // pred_check_branch
      %46 = sbr.rel (0) target = $region21
    $region20: #{birnn_forward.1} parent=1 // pred_region
      %s48 = ssub.s32 256, 256
      %49 = vsyncadd [#allocation9], %s48
      %s50 = sshll.u32 [#allocation10], 4
      %s51 = int_to_ptr.vmem [resolvable:$true] %s50
      %56 = dma.hbm_to_vmem [thread:$0]  %s4, 256, %s51, [#allocation9], 128, 128, 8
    $region21: #{birnn_forward.1} parent=1 // pred_fallthru
      _
    // Predicated region
    $region22: #{birnn_forward.1} parent=1 // pred_check
      _
    $region23: #{birnn_forward.1} parent=1 // pred_check_branch
      %58 = sbr.rel (0) target = $region25
    $region24: #{birnn_forward.1} parent=1 // pred_region
      %s60 = ssub.s32 2048, 2048
      %61 = vsyncadd [#allocation12], %s60
      %s62 = sshll.u32 [#allocation11], 4
      %s63 = int_to_ptr.vmem [resolvable:$true] %s62
      %68 = dma.hbm_to_vmem [thread:$0]  %s5, 2048, %s63, [#allocation12], 128, 128, 8
    $region25: #{birnn_forward.1} parent=1 // pred_fallthru
      _
    // Predicated region
    $region26: #{birnn_forward.1} parent=1 // pred_check
      _
    $region27: #{birnn_forward.1} parent=1 // pred_check_branch
      %70 = sbr.rel (0) target = $region29
    $region28: #{birnn_forward.1} parent=1 // pred_region
      _
    $region29: #{birnn_forward.1} parent=1 // pred_fallthru
      _
    // Predicated region
    $region30: #{birnn_forward.1} parent=1 // pred_check
      _
    $region31: #{birnn_forward.1} parent=1 // pred_check_branch
      %72 = sbr.rel (0) target = $region33
    $region32: #{birnn_forward.1} parent=1 // pred_region
      %s74 = ssub.s32 2048, 2048
      %75 = vsyncadd [#allocation12], %s74
      %s76 = sshll.u32 [#allocation13], 4
      %s77 = int_to_ptr.vmem [resolvable:$true] %s76
      %82 = dma.hbm_to_vmem [thread:$0]  %s7, 2048, %s77, [#allocation12], 128, 128, 8
    $region33: #{birnn_forward.1} parent=1 // pred_fallthru
      _
    // Predicated region
    $region34: #{birnn_forward.1} parent=1 // pred_check
      _
    $region35: #{birnn_forward.1} parent=1 // pred_check_branch
      %84 = sbr.rel (0) target = $region37
    $region36: #{birnn_forward.1} parent=1 // pred_region
      %s86 = ssub.s32 2048, 2048
      %87 = vsyncadd [#allocation15], %s86
      %s88 = sshll.u32 [#allocation14], 4
      %s89 = int_to_ptr.vmem [resolvable:$true] %s88
      %94 = dma.hbm_to_vmem [thread:$0]  %s8, 2048, %s89, [#allocation15], 128, 128, 8
    $region37: #{birnn_forward.1} parent=1 // pred_fallthru
      _
    // Predicated region
    $region38: #{birnn_forward.1} parent=1 // pred_check
      _
    $region39: #{birnn_forward.1} parent=1 // pred_check_branch
      %96 = sbr.rel (0) target = $region41
    $region40: #{birnn_forward.1} parent=1 // pred_region
      _
    $region41: #{birnn_forward.1} parent=1 // pred_fallthru
      _
    // Predicated region
    $region42: #{birnn_forward.1} parent=1 // pred_check
      _
    $region43: #{birnn_forward.1} parent=1 // pred_check_branch
      %98 = sbr.rel (0) target = $region45
    $region44: #{birnn_forward.1} parent=1 // pred_region
      %99 = dma.done [#allocation7], 128
    $region45: #{birnn_forward.1} parent=1 // pred_fallthru
      _
    // Predicated region
    $region46: #{birnn_forward.1} parent=1 // pred_check
      _
    $region47: #{birnn_forward.1} parent=1 // pred_check_branch
      %101 = sbr.rel (0) target = $region49
    $region48: #{birnn_forward.1} parent=1 // pred_region
      %102 = dma.done [#allocation9], 2048
    $region49: #{birnn_forward.1} parent=1 // pred_fallthru
      _
    // Predicated region
    $region50: #{birnn_forward.1} parent=1 // pred_check
      _
    $region51: #{birnn_forward.1} parent=1 // pred_check_branch
      %104 = sbr.rel (0) target = $region53
    $region52: #{birnn_forward.1} parent=1 // pred_region
      %105 = dma.done [#allocation9], 256
    $region53: #{birnn_forward.1} parent=1 // pred_fallthru
      _
    // Predicated region
    $region54: #{birnn_forward.1} parent=1 // pred_check
      _
    $region55: #{birnn_forward.1} parent=1 // pred_check_branch
      %107 = sbr.rel (0) target = $region57
    $region56: #{birnn_forward.1} parent=1 // pred_region
      %108 = dma.done [#allocation12], 2048
    $region57: #{birnn_forward.1} parent=1 // pred_fallthru
      _
    // Predicated region
    $region58: #{birnn_forward.1} parent=1 // pred_check
      _
    $region59: #{birnn_forward.1} parent=1 // pred_check_branch
      %110 = sbr.rel (0) target = $region61
    $region60: #{birnn_forward.1} parent=1 // pred_region
      %111 = dma.done [#allocation12], 2048
    $region61: #{birnn_forward.1} parent=1 // pred_fallthru
      _
    // Predicated region
    $region62: #{birnn_forward.1} parent=1 // pred_check
      _
    $region63: #{birnn_forward.1} parent=1 // pred_check_branch
      %113 = sbr.rel (0) target = $region65
    $region64: #{birnn_forward.1} parent=1 // pred_region
      %114 = dma.done [#allocation15], 2048
    $region65: #{birnn_forward.1} parent=1 // pred_fallthru
      _
    %v115 = vld [vmem:[#allocation6] sm:$0xff]
    %v116 = vld [vmem:[%s1] sm:$0xff]
    %v117 = vld [vmem:[%s1 + $0x8] sm:$0xff]
    %v118 = vld [vmem:[%s3] sm:$0x1]
    %v120 = vlaneseq
    %v121 = vshrl.u32 %v120, 7
    %v122 = vsub.s32 0, %v121
    %v123 = vrot.slane %v118, %v122
    %vm125 = vcmask 130048
    %v127 = vsel %vm125, %v115, 0
    %129 = vmatprep.subr.mxu0 0.0
    %130 = vmatpush1.msra.mxu0 %v116
    %131 = vmatprep.subr.mxu0 0.0
    %132 = vmatpush1.msra.mxu0 %v117
    %133 = vmatprep.subr.mxu0 0.0
    %134 = vmatpush1.msra.mxu0 0.0
    %135 = vmatprep.subr.mxu0 0.0
    %136 = vmatpush1.msra.mxu0 0.0
    %137 = vmatprep.subr.mxu0 0.0
    %138 = vmatpush1.msra.mxu0 0.0
    %139 = vmatprep.subr.mxu0 0.0
    %140 = vmatpush1.msra.mxu0 0.0
    %141 = vmatprep.subr.mxu0 0.0
    %142 = vmatpush1.msra.mxu0 0.0
    %143 = vmatprep.subr.mxu0 0.0
    %144 = vmatpush1.msra.mxu0 0.0
    %145 = vmatprep.subr.mxu0 0.0
    %146 = vmatpush1.msra.mxu0 0.0
    %147 = vmatprep.subr.mxu0 0.0
    %148 = vmatpush1.msra.mxu0 0.0
    %149 = vmatprep.subr.mxu0 0.0
    %150 = vmatpush1.msra.mxu0 0.0
    %151 = vmatprep.subr.mxu0 0.0
    %152 = vmatpush1.msra.mxu0 0.0
    %153 = vmatprep.subr.mxu0 0.0
    %154 = vmatpush1.msra.mxu0 0.0
    %155 = vmatprep.subr.mxu0 0.0
    %156 = vmatpush1.msra.mxu0 0.0
    %157 = vmatprep.subr.mxu0 0.0
    %158 = vmatpush1.msra.mxu0 0.0
    %159 = vmatprep.subr.mxu0 0.0
    %160 = vmatpush1.msra.mxu0 0.0
    %161 = vmatprep.subr.mxu0 0.0
    %162 = vmatpush1.msra.mxu0 0.0
    %163 = vmatprep.subr.mxu0 0.0
    %164 = vmatpush1.msra.mxu0 0.0
    %165 = vmatprep.subr.mxu0 0.0
    %166 = vmatpush1.msra.mxu0 0.0
    %167 = vmatprep.subr.mxu0 0.0
    %168 = vmatpush1.msra.mxu0 0.0
    %169 = vmatprep.subr.mxu0 0.0
    %170 = vmatpush1.msra.mxu0 0.0
    %171 = vmatprep.subr.mxu0 0.0
    %172 = vmatpush1.msra.mxu0 0.0
    %173 = vmatprep.subr.mxu0 0.0
    %174 = vmatpush1.msra.mxu0 0.0
    %175 = vmatprep.subr.mxu0 0.0
    %176 = vmatpush1.msra.mxu0 0.0
    %177 = vmatprep.subr.mxu0 0.0
    %178 = vmatpush1.msra.mxu0 0.0
    %179 = vmatprep.subr.mxu0 0.0
    %180 = vmatpush1.msra.mxu0 0.0
    %181 = vmatprep.subr.mxu0 0.0
    %182 = vmatpush1.msra.mxu0 0.0
    %183 = vmatprep.subr.mxu0 0.0
    %184 = vmatpush1.msra.mxu0 0.0
    %185 = vmatprep.subr.mxu0 0.0
    %186 = vmatpush1.msra.mxu0 0.0
    %187 = vmatprep.subr.mxu0 0.0
    %188 = vmatpush1.msra.mxu0 0.0
    %189 = vmatprep.subr.mxu0 0.0
    %190 = vmatpush1.msra.mxu0 0.0
    %191 = vmatprep.subr.mxu0 0.0
    %192 = vmatpush1.msra.mxu0 0.0
    %193 = vmatprep.mubr.f32.mxu0 0.0
    %194 = vmatmul.mubr.f32.gmra.mrb[0].mxu0 %v127
    %v195 = vpop.f32.mrb[0].mxu0
    %v196 = vadd.f32 %v123, %v195
    %v197 = vpop.f32.mrb[0].mxu0
    %198 = vdwg.mxu0
    %199 = vst [vmem:[#allocation2] sm:$0xff] %v196
    %v200 = vld [vmem:[#allocation10] sm:$0xff]
    %v201 = vld [vmem:[#allocation10 + $0x8] sm:$0xff]
    %v202 = vld [vmem:[%s6] sm:$0x1]
    %v204 = vlaneseq
    %v205 = vshrl.u32 %v204, 7
    %v206 = vsub.s32 0, %v205
    %v207 = vrot.slane %v202, %v206
    %209 = vmatprep.subr.mxu0 0.0
    %210 = vmatpush1.msra.mxu0 %v200
    %211 = vmatprep.subr.mxu0 0.0
    %212 = vmatpush1.msra.mxu0 %v201
    %213 = vmatprep.subr.mxu0 0.0
    %214 = vmatpush1.msra.mxu0 0.0
    %215 = vmatprep.subr.mxu0 0.0
    %216 = vmatpush1.msra.mxu0 0.0
    %217 = vmatprep.subr.mxu0 0.0
    %218 = vmatpush1.msra.mxu0 0.0
    %219 = vmatprep.subr.mxu0 0.0
    %220 = vmatpush1.msra.mxu0 0.0
    %221 = vmatprep.subr.mxu0 0.0
    %222 = vmatpush1.msra.mxu0 0.0
    %223 = vmatprep.subr.mxu0 0.0
    %224 = vmatpush1.msra.mxu0 0.0
    %225 = vmatprep.subr.mxu0 0.0
    %226 = vmatpush1.msra.mxu0 0.0
    %227 = vmatprep.subr.mxu0 0.0
    %228 = vmatpush1.msra.mxu0 0.0
    %229 = vmatprep.subr.mxu0 0.0
    %230 = vmatpush1.msra.mxu0 0.0
    %231 = vmatprep.subr.mxu0 0.0
    %232 = vmatpush1.msra.mxu0 0.0
    %233 = vmatprep.subr.mxu0 0.0
    %234 = vmatpush1.msra.mxu0 0.0
    %235 = vmatprep.subr.mxu0 0.0
    %236 = vmatpush1.msra.mxu0 0.0
    %237 = vmatprep.subr.mxu0 0.0
    %238 = vmatpush1.msra.mxu0 0.0
    %239 = vmatprep.subr.mxu0 0.0
    %240 = vmatpush1.msra.mxu0 0.0
    %241 = vmatprep.subr.mxu0 0.0
    %242 = vmatpush1.msra.mxu0 0.0
    %243 = vmatprep.subr.mxu0 0.0
    %244 = vmatpush1.msra.mxu0 0.0
    %245 = vmatprep.subr.mxu0 0.0
    %246 = vmatpush1.msra.mxu0 0.0
    %247 = vmatprep.subr.mxu0 0.0
    %248 = vmatpush1.msra.mxu0 0.0
    %249 = vmatprep.subr.mxu0 0.0
    %250 = vmatpush1.msra.mxu0 0.0
    %251 = vmatprep.subr.mxu0 0.0
    %252 = vmatpush1.msra.mxu0 0.0
    %253 = vmatprep.subr.mxu0 0.0
    %254 = vmatpush1.msra.mxu0 0.0
    %255 = vmatprep.subr.mxu0 0.0
    %256 = vmatpush1.msra.mxu0 0.0
    %257 = vmatprep.subr.mxu0 0.0
    %258 = vmatpush1.msra.mxu0 0.0
    %259 = vmatprep.subr.mxu0 0.0
    %260 = vmatpush1.msra.mxu0 0.0
    %261 = vmatprep.subr.mxu0 0.0
    %262 = vmatpush1.msra.mxu0 0.0
    %263 = vmatprep.subr.mxu0 0.0
    %264 = vmatpush1.msra.mxu0 0.0
    %265 = vmatprep.subr.mxu0 0.0
    %266 = vmatpush1.msra.mxu0 0.0
    %267 = vmatprep.subr.mxu0 0.0
    %268 = vmatpush1.msra.mxu0 0.0
    %269 = vmatprep.subr.mxu0 0.0
    %270 = vmatpush1.msra.mxu0 0.0
    %271 = vmatprep.subr.mxu0 0.0
    %272 = vmatpush1.msra.mxu0 0.0
    %273 = vmatprep.mubr.f32.mxu0 0.0
    %274 = vmatmul.mubr.f32.gmra.mrb[0].mxu0 %v127
    %v275 = vpop.f32.mrb[0].mxu0
    %v276 = vadd.f32 %v207, %v275
    %v277 = vpop.f32.mrb[0].mxu0
    %278 = vdwg.mxu0
    %279 = vst [vmem:[#allocation3] sm:$0xff] %v276
    %v280 = vld [vmem:[#allocation8] sm:$0xff]
    %v281 = vld [vmem:[#allocation8 + $0x8] sm:$0xff]
    %v282 = vld [vmem:[#allocation8 + $0x10] sm:$0xff]
    %v283 = vld [vmem:[#allocation8 + $0x18] sm:$0xff]
    %v284 = vld [vmem:[#allocation8 + $0x20] sm:$0xff]
    %v285 = vld [vmem:[#allocation8 + $0x28] sm:$0xff]
    %v286 = vld [vmem:[#allocation8 + $0x30] sm:$0xff]
    %v287 = vld [vmem:[#allocation8 + $0x38] sm:$0xff]
    %v288 = vld [vmem:[#allocation8 + $0x40] sm:$0xff]
    %v289 = vld [vmem:[#allocation8 + $0x48] sm:$0xff]
    %v290 = vld [vmem:[#allocation8 + $0x50] sm:$0xff]
    %v291 = vld [vmem:[#allocation8 + $0x58] sm:$0xff]
    %v292 = vld [vmem:[#allocation8 + $0x60] sm:$0xff]
    %v293 = vld [vmem:[#allocation8 + $0x68] sm:$0xff]
    %v294 = vld [vmem:[#allocation8 + $0x70] sm:$0xff]
    %v295 = vld [vmem:[#allocation8 + $0x78] sm:$0xff]
    %v296 = vld [vmem:[#allocation11] sm:$0xff]
    %v297 = vld [vmem:[#allocation11 + $0x8] sm:$0xff]
    %v298 = vld [vmem:[#allocation11 + $0x10] sm:$0xff]
    %v299 = vld [vmem:[#allocation11 + $0x18] sm:$0xff]
    %v300 = vld [vmem:[#allocation11 + $0x20] sm:$0xff]
    %v301 = vld [vmem:[#allocation11 + $0x28] sm:$0xff]
    %v302 = vld [vmem:[#allocation11 + $0x30] sm:$0xff]
    %v303 = vld [vmem:[#allocation11 + $0x38] sm:$0xff]
    %v304 = vld [vmem:[#allocation11 + $0x40] sm:$0xff]
    %v305 = vld [vmem:[#allocation11 + $0x48] sm:$0xff]
    %v306 = vld [vmem:[#allocation11 + $0x50] sm:$0xff]
    %v307 = vld [vmem:[#allocation11 + $0x58] sm:$0xff]
    %v308 = vld [vmem:[#allocation11 + $0x60] sm:$0xff]
    %v309 = vld [vmem:[#allocation11 + $0x68] sm:$0xff]
    %v310 = vld [vmem:[#allocation11 + $0x70] sm:$0xff]
    %v311 = vld [vmem:[#allocation11 + $0x78] sm:$0xff]
    %v312 = vld [vmem:[#allocation2] sm:$0x1]
    %313 = vmatprep.subr.mxu0 0.0
    %314 = vmatpush1.msra.mxu0 %v280
    %315 = vmatprep.subr.mxu0 0.0
    %316 = vmatpush1.msra.mxu0 %v281
    %317 = vmatprep.subr.mxu0 0.0
    %318 = vmatpush1.msra.mxu0 %v282
    %319 = vmatprep.subr.mxu0 0.0
    %320 = vmatpush1.msra.mxu0 %v283
    %321 = vmatprep.subr.mxu0 0.0
    %322 = vmatpush1.msra.mxu0 %v284
    %323 = vmatprep.subr.mxu0 0.0
    %324 = vmatpush1.msra.mxu0 %v285
    %325 = vmatprep.subr.mxu0 0.0
    %326 = vmatpush1.msra.mxu0 %v286
    %327 = vmatprep.subr.mxu0 0.0
    %328 = vmatpush1.msra.mxu0 %v287
    %329 = vmatprep.subr.mxu0 0.0
    %330 = vmatpush1.msra.mxu0 %v288
    %331 = vmatprep.subr.mxu0 0.0
    %332 = vmatpush1.msra.mxu0 %v289
    %333 = vmatprep.subr.mxu0 0.0
    %334 = vmatpush1.msra.mxu0 %v290
    %335 = vmatprep.subr.mxu0 0.0
    %336 = vmatpush1.msra.mxu0 %v291
    %337 = vmatprep.subr.mxu0 0.0
    %338 = vmatpush1.msra.mxu0 %v292
    %339 = vmatprep.subr.mxu0 0.0
    %340 = vmatpush1.msra.mxu0 %v293
    %341 = vmatprep.subr.mxu0 0.0
    %342 = vmatpush1.msra.mxu0 %v294
    %343 = vmatprep.subr.mxu0 0.0
    %344 = vmatpush1.msra.mxu0 %v295
    %345 = vmatprep.subr.mxu0 0.0
    %346 = vmatpush1.msra.mxu0 0.0
    %347 = vmatprep.subr.mxu0 0.0
    %348 = vmatpush1.msra.mxu0 0.0
    %349 = vmatprep.subr.mxu0 0.0
    %350 = vmatpush1.msra.mxu0 0.0
    %351 = vmatprep.subr.mxu0 0.0
    %352 = vmatpush1.msra.mxu0 0.0
    %353 = vmatprep.subr.mxu0 0.0
    %354 = vmatpush1.msra.mxu0 0.0
    %355 = vmatprep.subr.mxu0 0.0
    %356 = vmatpush1.msra.mxu0 0.0
    %357 = vmatprep.subr.mxu0 0.0
    %358 = vmatpush1.msra.mxu0 0.0
    %359 = vmatprep.subr.mxu0 0.0
    %360 = vmatpush1.msra.mxu0 0.0
    %361 = vmatprep.subr.mxu0 0.0
    %362 = vmatpush1.msra.mxu0 0.0
    %363 = vmatprep.subr.mxu0 0.0
    %364 = vmatpush1.msra.mxu0 0.0
    %365 = vmatprep.subr.mxu0 0.0
    %366 = vmatpush1.msra.mxu0 0.0
    %367 = vmatprep.subr.mxu0 0.0
    %368 = vmatpush1.msra.mxu0 0.0
    %369 = vmatprep.subr.mxu0 0.0
    %370 = vmatpush1.msra.mxu0 0.0
    %371 = vmatprep.subr.mxu0 0.0
    %372 = vmatpush1.msra.mxu0 0.0
    %373 = vmatprep.subr.mxu0 0.0
    %374 = vmatpush1.msra.mxu0 0.0
    %375 = vmatprep.subr.mxu0 0.0
    %376 = vmatpush1.msra.mxu0 0.0
    %377 = vmatprep.mubr.f32.mxu0 0.0
    %378 = vmatmul.mubr.f32.gmra.mrb[0].mxu0 0.0
    %v379 = vpop.f32.mrb[0].mxu0
    %v380 = vadd.f32 0.0, %v379
    %v381 = vpop.f32.mrb[0].mxu0
    %382 = vdwg.mxu0
    %v383 = vadd.f32 %v312, %v380
    %v384 = vld [vmem:[#allocation3 + $0x7] sm:$0x1]
    %385 = vmatprep.subr.mxu0 0.0
    %386 = vmatpush1.msra.mxu0 %v296
    %387 = vmatprep.subr.mxu0 0.0
    %388 = vmatpush1.msra.mxu0 %v297
    %389 = vmatprep.subr.mxu0 0.0
    %390 = vmatpush1.msra.mxu0 %v298
    %391 = vmatprep.subr.mxu0 0.0
    %392 = vmatpush1.msra.mxu0 %v299
    %393 = vmatprep.subr.mxu0 0.0
    %394 = vmatpush1.msra.mxu0 %v300
    %395 = vmatprep.subr.mxu0 0.0
    %396 = vmatpush1.msra.mxu0 %v301
    %397 = vmatprep.subr.mxu0 0.0
    %398 = vmatpush1.msra.mxu0 %v302
    %399 = vmatprep.subr.mxu0 0.0
    %400 = vmatpush1.msra.mxu0 %v303
    %401 = vmatprep.subr.mxu0 0.0
    %402 = vmatpush1.msra.mxu0 %v304
    %403 = vmatprep.subr.mxu0 0.0
    %404 = vmatpush1.msra.mxu0 %v305
    %405 = vmatprep.subr.mxu0 0.0
    %406 = vmatpush1.msra.mxu0 %v306
    %407 = vmatprep.subr.mxu0 0.0
    %408 = vmatpush1.msra.mxu0 %v307
    %409 = vmatprep.subr.mxu0 0.0
    %410 = vmatpush1.msra.mxu0 %v308
    %411 = vmatprep.subr.mxu0 0.0
    %412 = vmatpush1.msra.mxu0 %v309
    %413 = vmatprep.subr.mxu0 0.0
    %414 = vmatpush1.msra.mxu0 %v310
    %415 = vmatprep.subr.mxu0 0.0
    %416 = vmatpush1.msra.mxu0 %v311
    %417 = vmatprep.subr.mxu0 0.0
    %418 = vmatpush1.msra.mxu0 0.0
    %419 = vmatprep.subr.mxu0 0.0
    %420 = vmatpush1.msra.mxu0 0.0
    %421 = vmatprep.subr.mxu0 0.0
    %422 = vmatpush1.msra.mxu0 0.0
    %423 = vmatprep.subr.mxu0 0.0
    %424 = vmatpush1.msra.mxu0 0.0
    %425 = vmatprep.subr.mxu0 0.0
    %426 = vmatpush1.msra.mxu0 0.0
    %427 = vmatprep.subr.mxu0 0.0
    %428 = vmatpush1.msra.mxu0 0.0
    %429 = vmatprep.subr.mxu0 0.0
    %430 = vmatpush1.msra.mxu0 0.0
    %431 = vmatprep.subr.mxu0 0.0
    %432 = vmatpush1.msra.mxu0 0.0
    %433 = vmatprep.subr.mxu0 0.0
    %434 = vmatpush1.msra.mxu0 0.0
    %435 = vmatprep.subr.mxu0 0.0
    %436 = vmatpush1.msra.mxu0 0.0
    %437 = vmatprep.subr.mxu0 0.0
    %438 = vmatpush1.msra.mxu0 0.0
    %439 = vmatprep.subr.mxu0 0.0
    %440 = vmatpush1.msra.mxu0 0.0
    %441 = vmatprep.subr.mxu0 0.0
    %442 = vmatpush1.msra.mxu0 0.0
    %443 = vmatprep.subr.mxu0 0.0
    %444 = vmatpush1.msra.mxu0 0.0
    %445 = vmatprep.subr.mxu0 0.0
    %446 = vmatpush1.msra.mxu0 0.0
    %447 = vmatprep.subr.mxu0 0.0
    %448 = vmatpush1.msra.mxu0 0.0
    %449 = vmatprep.mubr.f32.mxu0 0.0
    %450 = vmatmul.mubr.f32.gmra.mrb[0].mxu0 0.0
    %v451 = vpop.f32.mrb[0].mxu0
    %v452 = vadd.f32 0.0, %v451
    %v453 = vpop.f32.mrb[0].mxu0
    %454 = vdwg.mxu0
    %v455 = vadd.f32 %v384, %v452
    %v456 = vtanh.pop %v383
    %v457 = vtanh.pop %v455
    %458 = vst [vmem:[#allocation4] sm:$0x1] %v456
    %459 = vst [vmem:[#allocation5 + $0x7] sm:$0x1] %v457
    %v460 = vld [vmem:[#allocation2 + $0x1] sm:$0x1]
    %461 = vmatprep.subr.mxu0 0.0
    %462 = vmatpush1.msra.mxu0 %v280
    %463 = vmatprep.subr.mxu0 0.0
    %464 = vmatpush1.msra.mxu0 %v281
    %465 = vmatprep.subr.mxu0 0.0
    %466 = vmatpush1.msra.mxu0 %v282
    %467 = vmatprep.subr.mxu0 0.0
    %468 = vmatpush1.msra.mxu0 %v283
    %469 = vmatprep.subr.mxu0 0.0
    %470 = vmatpush1.msra.mxu0 %v284
    %471 = vmatprep.subr.mxu0 0.0
    %472 = vmatpush1.msra.mxu0 %v285
    %473 = vmatprep.subr.mxu0 0.0
    %474 = vmatpush1.msra.mxu0 %v286
    %475 = vmatprep.subr.mxu0 0.0
    %476 = vmatpush1.msra.mxu0 %v287
    %477 = vmatprep.subr.mxu0 0.0
    %478 = vmatpush1.msra.mxu0 %v288
    %479 = vmatprep.subr.mxu0 0.0
    %480 = vmatpush1.msra.mxu0 %v289
    %481 = vmatprep.subr.mxu0 0.0
    %482 = vmatpush1.msra.mxu0 %v290
    %483 = vmatprep.subr.mxu0 0.0
    %484 = vmatpush1.msra.mxu0 %v291
    %485 = vmatprep.subr.mxu0 0.0
    %486 = vmatpush1.msra.mxu0 %v292
    %487 = vmatprep.subr.mxu0 0.0
    %488 = vmatpush1.msra.mxu0 %v293
    %489 = vmatprep.subr.mxu0 0.0
    %490 = vmatpush1.msra.mxu0 %v294
    %491 = vmatprep.subr.mxu0 0.0
    %492 = vmatpush1.msra.mxu0 %v295
    %493 = vmatprep.subr.mxu0 0.0
    %494 = vmatpush1.msra.mxu0 0.0
    %495 = vmatprep.subr.mxu0 0.0
    %496 = vmatpush1.msra.mxu0 0.0
    %497 = vmatprep.subr.mxu0 0.0
    %498 = vmatpush1.msra.mxu0 0.0
    %499 = vmatprep.subr.mxu0 0.0
    %500 = vmatpush1.msra.mxu0 0.0
    %501 = vmatprep.subr.mxu0 0.0
    %502 = vmatpush1.msra.mxu0 0.0
    %503 = vmatprep.subr.mxu0 0.0
    %504 = vmatpush1.msra.mxu0 0.0
    %505 = vmatprep.subr.mxu0 0.0
    %506 = vmatpush1.msra.mxu0 0.0
    %507 = vmatprep.subr.mxu0 0.0
    %508 = vmatpush1.msra.mxu0 0.0
    %509 = vmatprep.subr.mxu0 0.0
    %510 = vmatpush1.msra.mxu0 0.0
    %511 = vmatprep.subr.mxu0 0.0
    %512 = vmatpush1.msra.mxu0 0.0
    %513 = vmatprep.subr.mxu0 0.0
    %514 = vmatpush1.msra.mxu0 0.0
    %515 = vmatprep.subr.mxu0 0.0
    %516 = vmatpush1.msra.mxu0 0.0
    %517 = vmatprep.subr.mxu0 0.0
    %518 = vmatpush1.msra.mxu0 0.0
    %519 = vmatprep.subr.mxu0 0.0
    %520 = vmatpush1.msra.mxu0 0.0
    %521 = vmatprep.subr.mxu0 0.0
    %522 = vmatpush1.msra.mxu0 0.0
    %523 = vmatprep.subr.mxu0 0.0
    %524 = vmatpush1.msra.mxu0 0.0
    %525 = vmatprep.mubr.f32.mxu0 0.0
    %526 = vmatmul.mubr.f32.gmra.mrb[0].mxu0 %v456
    %v527 = vpop.f32.mrb[0].mxu0
    %v528 = vadd.f32 0.0, %v527
    %v529 = vpop.f32.mrb[0].mxu0
    %530 = vdwg.mxu0
    %v531 = vadd.f32 %v460, %v528
    %v532 = vld [vmem:[#allocation3 + $0x6] sm:$0x1]
    %533 = vmatprep.subr.mxu0 0.0
    %534 = vmatpush1.msra.mxu0 %v296
    %535 = vmatprep.subr.mxu0 0.0
    %536 = vmatpush1.msra.mxu0 %v297
    %537 = vmatprep.subr.mxu0 0.0
    %538 = vmatpush1.msra.mxu0 %v298
    %539 = vmatprep.subr.mxu0 0.0
    %540 = vmatpush1.msra.mxu0 %v299
    %541 = vmatprep.subr.mxu0 0.0
    %542 = vmatpush1.msra.mxu0 %v300
    %543 = vmatprep.subr.mxu0 0.0
    %544 = vmatpush1.msra.mxu0 %v301
    %545 = vmatprep.subr.mxu0 0.0
    %546 = vmatpush1.msra.mxu0 %v302
    %547 = vmatprep.subr.mxu0 0.0
    %548 = vmatpush1.msra.mxu0 %v303
    %549 = vmatprep.subr.mxu0 0.0
    %550 = vmatpush1.msra.mxu0 %v304
    %551 = vmatprep.subr.mxu0 0.0
    %552 = vmatpush1.msra.mxu0 %v305
    %553 = vmatprep.subr.mxu0 0.0
    %554 = vmatpush1.msra.mxu0 %v306
    %555 = vmatprep.subr.mxu0 0.0
    %556 = vmatpush1.msra.mxu0 %v307
    %557 = vmatprep.subr.mxu0 0.0
    %558 = vmatpush1.msra.mxu0 %v308
    %559 = vmatprep.subr.mxu0 0.0
    %560 = vmatpush1.msra.mxu0 %v309
    %561 = vmatprep.subr.mxu0 0.0
    %562 = vmatpush1.msra.mxu0 %v310
    %563 = vmatprep.subr.mxu0 0.0
    %564 = vmatpush1.msra.mxu0 %v311
    %565 = vmatprep.subr.mxu0 0.0
    %566 = vmatpush1.msra.mxu0 0.0
    %567 = vmatprep.subr.mxu0 0.0
    %568 = vmatpush1.msra.mxu0 0.0
    %569 = vmatprep.subr.mxu0 0.0
    %570 = vmatpush1.msra.mxu0 0.0
    %571 = vmatprep.subr.mxu0 0.0
    %572 = vmatpush1.msra.mxu0 0.0
    %573 = vmatprep.subr.mxu0 0.0
    %574 = vmatpush1.msra.mxu0 0.0
    %575 = vmatprep.subr.mxu0 0.0
    %576 = vmatpush1.msra.mxu0 0.0
    %577 = vmatprep.subr.mxu0 0.0
    %578 = vmatpush1.msra.mxu0 0.0
    %579 = vmatprep.subr.mxu0 0.0
    %580 = vmatpush1.msra.mxu0 0.0
    %581 = vmatprep.subr.mxu0 0.0
    %582 = vmatpush1.msra.mxu0 0.0
    %583 = vmatprep.subr.mxu0 0.0
    %584 = vmatpush1.msra.mxu0 0.0
    %585 = vmatprep.subr.mxu0 0.0
    %586 = vmatpush1.msra.mxu0 0.0
    %587 = vmatprep.subr.mxu0 0.0
    %588 = vmatpush1.msra.mxu0 0.0
    %589 = vmatprep.subr.mxu0 0.0
    %590 = vmatpush1.msra.mxu0 0.0
    %591 = vmatprep.subr.mxu0 0.0
    %592 = vmatpush1.msra.mxu0 0.0
    %593 = vmatprep.subr.mxu0 0.0
    %594 = vmatpush1.msra.mxu0 0.0
    %595 = vmatprep.subr.mxu0 0.0
    %596 = vmatpush1.msra.mxu0 0.0
    %597 = vmatprep.mubr.f32.mxu0 0.0
    %598 = vmatmul.mubr.f32.gmra.mrb[0].mxu0 %v457
    %v599 = vpop.f32.mrb[0].mxu0
    %v600 = vadd.f32 0.0, %v599
    %v601 = vpop.f32.mrb[0].mxu0
    %602 = vdwg.mxu0
    %v603 = vadd.f32 %v532, %v600
    %v604 = vtanh.pop %v531
    %v605 = vtanh.pop %v603
    %606 = vst [vmem:[#allocation4 + $0x1] sm:$0x1] %v604
    %607 = vst [vmem:[#allocation5 + $0x6] sm:$0x1] %v605
    %v608 = vld [vmem:[#allocation2 + $0x2] sm:$0x1]
    %609 = vmatprep.subr.mxu0 0.0
    %610 = vmatpush1.msra.mxu0 %v280
    %611 = vmatprep.subr.mxu0 0.0
    %612 = vmatpush1.msra.mxu0 %v281
    %613 = vmatprep.subr.mxu0 0.0
    %614 = vmatpush1.msra.mxu0 %v282
    %615 = vmatprep.subr.mxu0 0.0
    %616 = vmatpush1.msra.mxu0 %v283
    %617 = vmatprep.subr.mxu0 0.0
    %618 = vmatpush1.msra.mxu0 %v284
    %619 = vmatprep.subr.mxu0 0.0
    %620 = vmatpush1.msra.mxu0 %v285
    %621 = vmatprep.subr.mxu0 0.0
    %622 = vmatpush1.msra.mxu0 %v286
    %623 = vmatprep.subr.mxu0 0.0
    %624 = vmatpush1.msra.mxu0 %v287
    %625 = vmatprep.subr.mxu0 0.0
    %626 = vmatpush1.msra.mxu0 %v288
    %627 = vmatprep.subr.mxu0 0.0
    %628 = vmatpush1.msra.mxu0 %v289
    %629 = vmatprep.subr.mxu0 0.0
    %630 = vmatpush1.msra.mxu0 %v290
    %631 = vmatprep.subr.mxu0 0.0
    %632 = vmatpush1.msra.mxu0 %v291
    %633 = vmatprep.subr.mxu0 0.0
    %634 = vmatpush1.msra.mxu0 %v292
    %635 = vmatprep.subr.mxu0 0.0
    %636 = vmatpush1.msra.mxu0 %v293
    %637 = vmatprep.subr.mxu0 0.0
    %638 = vmatpush1.msra.mxu0 %v294
    %639 = vmatprep.subr.mxu0 0.0
    %640 = vmatpush1.msra.mxu0 %v295
    %641 = vmatprep.subr.mxu0 0.0
    %642 = vmatpush1.msra.mxu0 0.0
    %643 = vmatprep.subr.mxu0 0.0
    %644 = vmatpush1.msra.mxu0 0.0
    %645 = vmatprep.subr.mxu0 0.0
    %646 = vmatpush1.msra.mxu0 0.0
    %647 = vmatprep.subr.mxu0 0.0
    %648 = vmatpush1.msra.mxu0 0.0
    %649 = vmatprep.subr.mxu0 0.0
    %650 = vmatpush1.msra.mxu0 0.0
    %651 = vmatprep.subr.mxu0 0.0
    %652 = vmatpush1.msra.mxu0 0.0
    %653 = vmatprep.subr.mxu0 0.0
    %654 = vmatpush1.msra.mxu0 0.0
    %655 = vmatprep.subr.mxu0 0.0
    %656 = vmatpush1.msra.mxu0 0.0
    %657 = vmatprep.subr.mxu0 0.0
    %658 = vmatpush1.msra.mxu0 0.0
    %659 = vmatprep.subr.mxu0 0.0
    %660 = vmatpush1.msra.mxu0 0.0
    %661 = vmatprep.subr.mxu0 0.0
    %662 = vmatpush1.msra.mxu0 0.0
    %663 = vmatprep.subr.mxu0 0.0
    %664 = vmatpush1.msra.mxu0 0.0
    %665 = vmatprep.subr.mxu0 0.0
    %666 = vmatpush1.msra.mxu0 0.0
    %667 = vmatprep.subr.mxu0 0.0
    %668 = vmatpush1.msra.mxu0 0.0
    %669 = vmatprep.subr.mxu0 0.0
    %670 = vmatpush1.msra.mxu0 0.0
    %671 = vmatprep.subr.mxu0 0.0
    %672 = vmatpush1.msra.mxu0 0.0
    %673 = vmatprep.mubr.f32.mxu0 0.0
    %674 = vmatmul.mubr.f32.gmra.mrb[0].mxu0 %v604
    %v675 = vpop.f32.mrb[0].mxu0
    %v676 = vadd.f32 0.0, %v675
    %v677 = vpop.f32.mrb[0].mxu0
    %678 = vdwg.mxu0
    %v679 = vadd.f32 %v608, %v676
    %v680 = vld [vmem:[#allocation3 + $0x5] sm:$0x1]
    %681 = vmatprep.subr.mxu0 0.0
    %682 = vmatpush1.msra.mxu0 %v296
    %683 = vmatprep.subr.mxu0 0.0
    %684 = vmatpush1.msra.mxu0 %v297
    %685 = vmatprep.subr.mxu0 0.0
    %686 = vmatpush1.msra.mxu0 %v298
    %687 = vmatprep.subr.mxu0 0.0
    %688 = vmatpush1.msra.mxu0 %v299
    %689 = vmatprep.subr.mxu0 0.0
    %690 = vmatpush1.msra.mxu0 %v300
    %691 = vmatprep.subr.mxu0 0.0
    %692 = vmatpush1.msra.mxu0 %v301
    %693 = vmatprep.subr.mxu0 0.0
    %694 = vmatpush1.msra.mxu0 %v302
    %695 = vmatprep.subr.mxu0 0.0
    %696 = vmatpush1.msra.mxu0 %v303
    %697 = vmatprep.subr.mxu0 0.0
    %698 = vmatpush1.msra.mxu0 %v304
    %699 = vmatprep.subr.mxu0 0.0
    %700 = vmatpush1.msra.mxu0 %v305
    %701 = vmatprep.subr.mxu0 0.0
    %702 = vmatpush1.msra.mxu0 %v306
    %703 = vmatprep.subr.mxu0 0.0
    %704 = vmatpush1.msra.mxu0 %v307
    %705 = vmatprep.subr.mxu0 0.0
    %706 = vmatpush1.msra.mxu0 %v308
    %707 = vmatprep.subr.mxu0 0.0
    %708 = vmatpush1.msra.mxu0 %v309
    %709 = vmatprep.subr.mxu0 0.0
    %710 = vmatpush1.msra.mxu0 %v310
    %711 = vmatprep.subr.mxu0 0.0
    %712 = vmatpush1.msra.mxu0 %v311
    %713 = vmatprep.subr.mxu0 0.0
    %714 = vmatpush1.msra.mxu0 0.0
    %715 = vmatprep.subr.mxu0 0.0
    %716 = vmatpush1.msra.mxu0 0.0
    %717 = vmatprep.subr.mxu0 0.0
    %718 = vmatpush1.msra.mxu0 0.0
    %719 = vmatprep.subr.mxu0 0.0
    %720 = vmatpush1.msra.mxu0 0.0
    %721 = vmatprep.subr.mxu0 0.0
    %722 = vmatpush1.msra.mxu0 0.0
    %723 = vmatprep.subr.mxu0 0.0
    %724 = vmatpush1.msra.mxu0 0.0
    %725 = vmatprep.subr.mxu0 0.0
    %726 = vmatpush1.msra.mxu0 0.0
    %727 = vmatprep.subr.mxu0 0.0
    %728 = vmatpush1.msra.mxu0 0.0
    %729 = vmatprep.subr.mxu0 0.0
    %730 = vmatpush1.msra.mxu0 0.0
    %731 = vmatprep.subr.mxu0 0.0
    %732 = vmatpush1.msra.mxu0 0.0
    %733 = vmatprep.subr.mxu0 0.0
    %734 = vmatpush1.msra.mxu0 0.0
    %735 = vmatprep.subr.mxu0 0.0
    %736 = vmatpush1.msra.mxu0 0.0
    %737 = vmatprep.subr.mxu0 0.0
    %738 = vmatpush1.msra.mxu0 0.0
    %739 = vmatprep.subr.mxu0 0.0
    %740 = vmatpush1.msra.mxu0 0.0
    %741 = vmatprep.subr.mxu0 0.0
    %742 = vmatpush1.msra.mxu0 0.0
    %743 = vmatprep.subr.mxu0 0.0
    %744 = vmatpush1.msra.mxu0 0.0
    %745 = vmatprep.mubr.f32.mxu0 0.0
    %746 = vmatmul.mubr.f32.gmra.mrb[0].mxu0 %v605
    %v747 = vpop.f32.mrb[0].mxu0
    %v748 = vadd.f32 0.0, %v747
    %v749 = vpop.f32.mrb[0].mxu0
    %750 = vdwg.mxu0
    %v751 = vadd.f32 %v680, %v748
    %v752 = vtanh.pop %v679
    %v753 = vtanh.pop %v751
    %754 = vst [vmem:[#allocation4 + $0x2] sm:$0x1] %v752
    %755 = vst [vmem:[#allocation5 + $0x5] sm:$0x1] %v753
    %v756 = vld [vmem:[#allocation2 + $0x3] sm:$0x1]
    %757 = vmatprep.subr.mxu0 0.0
    %758 = vmatpush1.msra.mxu0 %v280
    %759 = vmatprep.subr.mxu0 0.0
    %760 = vmatpush1.msra.mxu0 %v281
    %761 = vmatprep.subr.mxu0 0.0
    %762 = vmatpush1.msra.mxu0 %v282
    %763 = vmatprep.subr.mxu0 0.0
    %764 = vmatpush1.msra.mxu0 %v283
    %765 = vmatprep.subr.mxu0 0.0
    %766 = vmatpush1.msra.mxu0 %v284
    %767 = vmatprep.subr.mxu0 0.0
    %768 = vmatpush1.msra.mxu0 %v285
    %769 = vmatprep.subr.mxu0 0.0
    %770 = vmatpush1.msra.mxu0 %v286
    %771 = vmatprep.subr.mxu0 0.0
    %772 = vmatpush1.msra.mxu0 %v287
    %773 = vmatprep.subr.mxu0 0.0
    %774 = vmatpush1.msra.mxu0 %v288
    %775 = vmatprep.subr.mxu0 0.0
    %776 = vmatpush1.msra.mxu0 %v289
    %777 = vmatprep.subr.mxu0 0.0
    %778 = vmatpush1.msra.mxu0 %v290
    %779 = vmatprep.subr.mxu0 0.0
    %780 = vmatpush1.msra.mxu0 %v291
    %781 = vmatprep.subr.mxu0 0.0
    %782 = vmatpush1.msra.mxu0 %v292
    %783 = vmatprep.subr.mxu0 0.0
    %784 = vmatpush1.msra.mxu0 %v293
    %785 = vmatprep.subr.mxu0 0.0
    %786 = vmatpush1.msra.mxu0 %v294
    %787 = vmatprep.subr.mxu0 0.0
    %788 = vmatpush1.msra.mxu0 %v295
    %789 = vmatprep.subr.mxu0 0.0
    %790 = vmatpush1.msra.mxu0 0.0
    %791 = vmatprep.subr.mxu0 0.0
    %792 = vmatpush1.msra.mxu0 0.0
    %793 = vmatprep.subr.mxu0 0.0
    %794 = vmatpush1.msra.mxu0 0.0
    %795 = vmatprep.subr.mxu0 0.0
    %796 = vmatpush1.msra.mxu0 0.0
    %797 = vmatprep.subr.mxu0 0.0
    %798 = vmatpush1.msra.mxu0 0.0
    %799 = vmatprep.subr.mxu0 0.0
    %800 = vmatpush1.msra.mxu0 0.0
    %801 = vmatprep.subr.mxu0 0.0
    %802 = vmatpush1.msra.mxu0 0.0
    %803 = vmatprep.subr.mxu0 0.0
    %804 = vmatpush1.msra.mxu0 0.0
    %805 = vmatprep.subr.mxu0 0.0
    %806 = vmatpush1.msra.mxu0 0.0
    %807 = vmatprep.subr.mxu0 0.0
    %808 = vmatpush1.msra.mxu0 0.0
    %809 = vmatprep.subr.mxu0 0.0
    %810 = vmatpush1.msra.mxu0 0.0
    %811 = vmatprep.subr.mxu0 0.0
    %812 = vmatpush1.msra.mxu0 0.0
    %813 = vmatprep.subr.mxu0 0.0
    %814 = vmatpush1.msra.mxu0 0.0
    %815 = vmatprep.subr.mxu0 0.0
    %816 = vmatpush1.msra.mxu0 0.0
    %817 = vmatprep.subr.mxu0 0.0
    %818 = vmatpush1.msra.mxu0 0.0
    %819 = vmatprep.subr.mxu0 0.0
    %820 = vmatpush1.msra.mxu0 0.0
    %821 = vmatprep.mubr.f32.mxu0 0.0
    %822 = vmatmul.mubr.f32.gmra.mrb[0].mxu0 %v752
    %v823 = vpop.f32.mrb[0].mxu0
    %v824 = vadd.f32 0.0, %v823
    %v825 = vpop.f32.mrb[0].mxu0
    %826 = vdwg.mxu0
    %v827 = vadd.f32 %v756, %v824
    %v828 = vld [vmem:[#allocation3 + $0x4] sm:$0x1]
    %829 = vmatprep.subr.mxu0 0.0
    %830 = vmatpush1.msra.mxu0 %v296
    %831 = vmatprep.subr.mxu0 0.0
    %832 = vmatpush1.msra.mxu0 %v297
    %833 = vmatprep.subr.mxu0 0.0
    %834 = vmatpush1.msra.mxu0 %v298
    %835 = vmatprep.subr.mxu0 0.0
    %836 = vmatpush1.msra.mxu0 %v299
    %837 = vmatprep.subr.mxu0 0.0
    %838 = vmatpush1.msra.mxu0 %v300
    %839 = vmatprep.subr.mxu0 0.0
    %840 = vmatpush1.msra.mxu0 %v301
    %841 = vmatprep.subr.mxu0 0.0
    %842 = vmatpush1.msra.mxu0 %v302
    %843 = vmatprep.subr.mxu0 0.0
    %844 = vmatpush1.msra.mxu0 %v303
    %845 = vmatprep.subr.mxu0 0.0
    %846 = vmatpush1.msra.mxu0 %v304
    %847 = vmatprep.subr.mxu0 0.0
    %848 = vmatpush1.msra.mxu0 %v305
    %849 = vmatprep.subr.mxu0 0.0
    %850 = vmatpush1.msra.mxu0 %v306
    %851 = vmatprep.subr.mxu0 0.0
    %852 = vmatpush1.msra.mxu0 %v307
    %853 = vmatprep.subr.mxu0 0.0
    %854 = vmatpush1.msra.mxu0 %v308
    %855 = vmatprep.subr.mxu0 0.0
    %856 = vmatpush1.msra.mxu0 %v309
    %857 = vmatprep.subr.mxu0 0.0
    %858 = vmatpush1.msra.mxu0 %v310
    %859 = vmatprep.subr.mxu0 0.0
    %860 = vmatpush1.msra.mxu0 %v311
    %861 = vmatprep.subr.mxu0 0.0
    %862 = vmatpush1.msra.mxu0 0.0
    %863 = vmatprep.subr.mxu0 0.0
    %864 = vmatpush1.msra.mxu0 0.0
    %865 = vmatprep.subr.mxu0 0.0
    %866 = vmatpush1.msra.mxu0 0.0
    %867 = vmatprep.subr.mxu0 0.0
    %868 = vmatpush1.msra.mxu0 0.0
    %869 = vmatprep.subr.mxu0 0.0
    %870 = vmatpush1.msra.mxu0 0.0
    %871 = vmatprep.subr.mxu0 0.0
    %872 = vmatpush1.msra.mxu0 0.0
    %873 = vmatprep.subr.mxu0 0.0
    %874 = vmatpush1.msra.mxu0 0.0
    %875 = vmatprep.subr.mxu0 0.0
    %876 = vmatpush1.msra.mxu0 0.0
    %877 = vmatprep.subr.mxu0 0.0
    %878 = vmatpush1.msra.mxu0 0.0
    %879 = vmatprep.subr.mxu0 0.0
    %880 = vmatpush1.msra.mxu0 0.0
    %881 = vmatprep.subr.mxu0 0.0
    %882 = vmatpush1.msra.mxu0 0.0
    %883 = vmatprep.subr.mxu0 0.0
    %884 = vmatpush1.msra.mxu0 0.0
    %885 = vmatprep.subr.mxu0 0.0
    %886 = vmatpush1.msra.mxu0 0.0
    %887 = vmatprep.subr.mxu0 0.0
    %888 = vmatpush1.msra.mxu0 0.0
    %889 = vmatprep.subr.mxu0 0.0
    %890 = vmatpush1.msra.mxu0 0.0
    %891 = vmatprep.subr.mxu0 0.0
    %892 = vmatpush1.msra.mxu0 0.0
    %893 = vmatprep.mubr.f32.mxu0 0.0
    %894 = vmatmul.mubr.f32.gmra.mrb[0].mxu0 %v753
    %v895 = vpop.f32.mrb[0].mxu0
    %v896 = vadd.f32 0.0, %v895
    %v897 = vpop.f32.mrb[0].mxu0
    %898 = vdwg.mxu0
    %v899 = vadd.f32 %v828, %v896
    %v900 = vtanh.pop %v827
    %v901 = vtanh.pop %v899
    %902 = vst [vmem:[#allocation4 + $0x3] sm:$0x1] %v900
    %903 = vst [vmem:[#allocation5 + $0x4] sm:$0x1] %v901
    %v904 = vld [vmem:[#allocation2 + $0x4] sm:$0x1]
    %905 = vmatprep.subr.mxu0 0.0
    %906 = vmatpush1.msra.mxu0 %v280
    %907 = vmatprep.subr.mxu0 0.0
    %908 = vmatpush1.msra.mxu0 %v281
    %909 = vmatprep.subr.mxu0 0.0
    %910 = vmatpush1.msra.mxu0 %v282
    %911 = vmatprep.subr.mxu0 0.0
    %912 = vmatpush1.msra.mxu0 %v283
    %913 = vmatprep.subr.mxu0 0.0
    %914 = vmatpush1.msra.mxu0 %v284
    %915 = vmatprep.subr.mxu0 0.0
    %916 = vmatpush1.msra.mxu0 %v285
    %917 = vmatprep.subr.mxu0 0.0
    %918 = vmatpush1.msra.mxu0 %v286
    %919 = vmatprep.subr.mxu0 0.0
    %920 = vmatpush1.msra.mxu0 %v287
    %921 = vmatprep.subr.mxu0 0.0
    %922 = vmatpush1.msra.mxu0 %v288
    %923 = vmatprep.subr.mxu0 0.0
    %924 = vmatpush1.msra.mxu0 %v289
    %925 = vmatprep.subr.mxu0 0.0
    %926 = vmatpush1.msra.mxu0 %v290
    %927 = vmatprep.subr.mxu0 0.0
    %928 = vmatpush1.msra.mxu0 %v291
    %929 = vmatprep.subr.mxu0 0.0
    %930 = vmatpush1.msra.mxu0 %v292
    %931 = vmatprep.subr.mxu0 0.0
    %932 = vmatpush1.msra.mxu0 %v293
    %933 = vmatprep.subr.mxu0 0.0
    %934 = vmatpush1.msra.mxu0 %v294
    %935 = vmatprep.subr.mxu0 0.0
    %936 = vmatpush1.msra.mxu0 %v295
    %937 = vmatprep.subr.mxu0 0.0
    %938 = vmatpush1.msra.mxu0 0.0
    %939 = vmatprep.subr.mxu0 0.0
    %940 = vmatpush1.msra.mxu0 0.0
    %941 = vmatprep.subr.mxu0 0.0
    %942 = vmatpush1.msra.mxu0 0.0
    %943 = vmatprep.subr.mxu0 0.0
    %944 = vmatpush1.msra.mxu0 0.0
    %945 = vmatprep.subr.mxu0 0.0
    %946 = vmatpush1.msra.mxu0 0.0
    %947 = vmatprep.subr.mxu0 0.0
    %948 = vmatpush1.msra.mxu0 0.0
    %949 = vmatprep.subr.mxu0 0.0
    %950 = vmatpush1.msra.mxu0 0.0
    %951 = vmatprep.subr.mxu0 0.0
    %952 = vmatpush1.msra.mxu0 0.0
    %953 = vmatprep.subr.mxu0 0.0
    %954 = vmatpush1.msra.mxu0 0.0
    %955 = vmatprep.subr.mxu0 0.0
    %956 = vmatpush1.msra.mxu0 0.0
    %957 = vmatprep.subr.mxu0 0.0
    %958 = vmatpush1.msra.mxu0 0.0
    %959 = vmatprep.subr.mxu0 0.0
    %960 = vmatpush1.msra.mxu0 0.0
    %961 = vmatprep.subr.mxu0 0.0
    %962 = vmatpush1.msra.mxu0 0.0
    %963 = vmatprep.subr.mxu0 0.0
    %964 = vmatpush1.msra.mxu0 0.0
    %965 = vmatprep.subr.mxu0 0.0
    %966 = vmatpush1.msra.mxu0 0.0
    %967 = vmatprep.subr.mxu0 0.0
    %968 = vmatpush1.msra.mxu0 0.0
    %969 = vmatprep.mubr.f32.mxu0 0.0
    %970 = vmatmul.mubr.f32.gmra.mrb[0].mxu0 %v900
    %v971 = vpop.f32.mrb[0].mxu0
    %v972 = vadd.f32 0.0, %v971
    %v973 = vpop.f32.mrb[0].mxu0
    %974 = vdwg.mxu0
    %v975 = vadd.f32 %v904, %v972
    %v976 = vld [vmem:[#allocation3 + $0x3] sm:$0x1]
    %977 = vmatprep.subr.mxu0 0.0
    %978 = vmatpush1.msra.mxu0 %v296
    %979 = vmatprep.subr.mxu0 0.0
    %980 = vmatpush1.msra.mxu0 %v297
    %981 = vmatprep.subr.mxu0 0.0
    %982 = vmatpush1.msra.mxu0 %v298
    %983 = vmatprep.subr.mxu0 0.0
    %984 = vmatpush1.msra.mxu0 %v299
    %985 = vmatprep.subr.mxu0 0.0
    %986 = vmatpush1.msra.mxu0 %v300
    %987 = vmatprep.subr.mxu0 0.0
    %988 = vmatpush1.msra.mxu0 %v301
    %989 = vmatprep.subr.mxu0 0.0
    %990 = vmatpush1.msra.mxu0 %v302
    %991 = vmatprep.subr.mxu0 0.0
    %992 = vmatpush1.msra.mxu0 %v303
    %993 = vmatprep.subr.mxu0 0.0
    %994 = vmatpush1.msra.mxu0 %v304
    %995 = vmatprep.subr.mxu0 0.0
    %996 = vmatpush1.msra.mxu0 %v305
    %997 = vmatprep.subr.mxu0 0.0
    %998 = vmatpush1.msra.mxu0 %v306
    %999 = vmatprep.subr.mxu0 0.0
    %1000 = vmatpush1.msra.mxu0 %v307
    %1001 = vmatprep.subr.mxu0 0.0
    %1002 = vmatpush1.msra.mxu0 %v308
    %1003 = vmatprep.subr.mxu0 0.0
    %1004 = vmatpush1.msra.mxu0 %v309
    %1005 = vmatprep.subr.mxu0 0.0
    %1006 = vmatpush1.msra.mxu0 %v310
    %1007 = vmatprep.subr.mxu0 0.0
    %1008 = vmatpush1.msra.mxu0 %v311
    %1009 = vmatprep.subr.mxu0 0.0
    %1010 = vmatpush1.msra.mxu0 0.0
    %1011 = vmatprep.subr.mxu0 0.0
    %1012 = vmatpush1.msra.mxu0 0.0
    %1013 = vmatprep.subr.mxu0 0.0
    %1014 = vmatpush1.msra.mxu0 0.0
    %1015 = vmatprep.subr.mxu0 0.0
    %1016 = vmatpush1.msra.mxu0 0.0
    %1017 = vmatprep.subr.mxu0 0.0
    %1018 = vmatpush1.msra.mxu0 0.0
    %1019 = vmatprep.subr.mxu0 0.0
    %1020 = vmatpush1.msra.mxu0 0.0
    %1021 = vmatprep.subr.mxu0 0.0
    %1022 = vmatpush1.msra.mxu0 0.0
    %1023 = vmatprep.subr.mxu0 0.0
    %1024 = vmatpush1.msra.mxu0 0.0
    %1025 = vmatprep.subr.mxu0 0.0
    %1026 = vmatpush1.msra.mxu0 0.0
    %1027 = vmatprep.subr.mxu0 0.0
    %1028 = vmatpush1.msra.mxu0 0.0
    %1029 = vmatprep.subr.mxu0 0.0
    %1030 = vmatpush1.msra.mxu0 0.0
    %1031 = vmatprep.subr.mxu0 0.0
    %1032 = vmatpush1.msra.mxu0 0.0
    %1033 = vmatprep.subr.mxu0 0.0
    %1034 = vmatpush1.msra.mxu0 0.0
    %1035 = vmatprep.subr.mxu0 0.0
    %1036 = vmatpush1.msra.mxu0 0.0
    %1037 = vmatprep.subr.mxu0 0.0
    %1038 = vmatpush1.msra.mxu0 0.0
    %1039 = vmatprep.subr.mxu0 0.0
    %1040 = vmatpush1.msra.mxu0 0.0
    %1041 = vmatprep.mubr.f32.mxu0 0.0
    %1042 = vmatmul.mubr.f32.gmra.mrb[0].mxu0 %v901
    %v1043 = vpop.f32.mrb[0].mxu0
    %v1044 = vadd.f32 0.0, %v1043
    %v1045 = vpop.f32.mrb[0].mxu0
    %1046 = vdwg.mxu0
    %v1047 = vadd.f32 %v976, %v1044
    %v1048 = vtanh.pop %v975
    %v1049 = vtanh.pop %v1047
    %1050 = vst [vmem:[#allocation4 + $0x4] sm:$0x1] %v1048
    %1051 = vst [vmem:[#allocation5 + $0x3] sm:$0x1] %v1049
    %v1052 = vld [vmem:[#allocation2 + $0x5] sm:$0x1]
    %1053 = vmatprep.subr.mxu0 0.0
    %1054 = vmatpush1.msra.mxu0 %v280
    %1055 = vmatprep.subr.mxu0 0.0
    %1056 = vmatpush1.msra.mxu0 %v281
    %1057 = vmatprep.subr.mxu0 0.0
    %1058 = vmatpush1.msra.mxu0 %v282
    %1059 = vmatprep.subr.mxu0 0.0
    %1060 = vmatpush1.msra.mxu0 %v283
    %1061 = vmatprep.subr.mxu0 0.0
    %1062 = vmatpush1.msra.mxu0 %v284
    %1063 = vmatprep.subr.mxu0 0.0
    %1064 = vmatpush1.msra.mxu0 %v285
    %1065 = vmatprep.subr.mxu0 0.0
    %1066 = vmatpush1.msra.mxu0 %v286
    %1067 = vmatprep.subr.mxu0 0.0
    %1068 = vmatpush1.msra.mxu0 %v287
    %1069 = vmatprep.subr.mxu0 0.0
    %1070 = vmatpush1.msra.mxu0 %v288
    %1071 = vmatprep.subr.mxu0 0.0
    %1072 = vmatpush1.msra.mxu0 %v289
    %1073 = vmatprep.subr.mxu0 0.0
    %1074 = vmatpush1.msra.mxu0 %v290
    %1075 = vmatprep.subr.mxu0 0.0
    %1076 = vmatpush1.msra.mxu0 %v291
    %1077 = vmatprep.subr.mxu0 0.0
    %1078 = vmatpush1.msra.mxu0 %v292
    %1079 = vmatprep.subr.mxu0 0.0
    %1080 = vmatpush1.msra.mxu0 %v293
    %1081 = vmatprep.subr.mxu0 0.0
    %1082 = vmatpush1.msra.mxu0 %v294
    %1083 = vmatprep.subr.mxu0 0.0
    %1084 = vmatpush1.msra.mxu0 %v295
    %1085 = vmatprep.subr.mxu0 0.0
    %1086 = vmatpush1.msra.mxu0 0.0
    %1087 = vmatprep.subr.mxu0 0.0
    %1088 = vmatpush1.msra.mxu0 0.0
    %1089 = vmatprep.subr.mxu0 0.0
    %1090 = vmatpush1.msra.mxu0 0.0
    %1091 = vmatprep.subr.mxu0 0.0
    %1092 = vmatpush1.msra.mxu0 0.0
    %1093 = vmatprep.subr.mxu0 0.0
    %1094 = vmatpush1.msra.mxu0 0.0
    %1095 = vmatprep.subr.mxu0 0.0
    %1096 = vmatpush1.msra.mxu0 0.0
    %1097 = vmatprep.subr.mxu0 0.0
    %1098 = vmatpush1.msra.mxu0 0.0
    %1099 = vmatprep.subr.mxu0 0.0
    %1100 = vmatpush1.msra.mxu0 0.0
    %1101 = vmatprep.subr.mxu0 0.0
    %1102 = vmatpush1.msra.mxu0 0.0
    %1103 = vmatprep.subr.mxu0 0.0
    %1104 = vmatpush1.msra.mxu0 0.0
    %1105 = vmatprep.subr.mxu0 0.0
    %1106 = vmatpush1.msra.mxu0 0.0
    %1107 = vmatprep.subr.mxu0 0.0
    %1108 = vmatpush1.msra.mxu0 0.0
    %1109 = vmatprep.subr.mxu0 0.0
    %1110 = vmatpush1.msra.mxu0 0.0
    %1111 = vmatprep.subr.mxu0 0.0
    %1112 = vmatpush1.msra.mxu0 0.0
    %1113 = vmatprep.subr.mxu0 0.0
    %1114 = vmatpush1.msra.mxu0 0.0
    %1115 = vmatprep.subr.mxu0 0.0
    %1116 = vmatpush1.msra.mxu0 0.0
    %1117 = vmatprep.mubr.f32.mxu0 0.0
    %1118 = vmatmul.mubr.f32.gmra.mrb[0].mxu0 %v1048
    %v1119 = vpop.f32.mrb[0].mxu0
    %v1120 = vadd.f32 0.0, %v1119
    %v1121 = vpop.f32.mrb[0].mxu0
    %1122 = vdwg.mxu0
    %v1123 = vadd.f32 %v1052, %v1120
    %v1124 = vld [vmem:[#allocation3 + $0x2] sm:$0x1]
    %1125 = vmatprep.subr.mxu0 0.0
    %1126 = vmatpush1.msra.mxu0 %v296
    %1127 = vmatprep.subr.mxu0 0.0
    %1128 = vmatpush1.msra.mxu0 %v297
    %1129 = vmatprep.subr.mxu0 0.0
    %1130 = vmatpush1.msra.mxu0 %v298
    %1131 = vmatprep.subr.mxu0 0.0
    %1132 = vmatpush1.msra.mxu0 %v299
    %1133 = vmatprep.subr.mxu0 0.0
    %1134 = vmatpush1.msra.mxu0 %v300
    %1135 = vmatprep.subr.mxu0 0.0
    %1136 = vmatpush1.msra.mxu0 %v301
    %1137 = vmatprep.subr.mxu0 0.0
    %1138 = vmatpush1.msra.mxu0 %v302
    %1139 = vmatprep.subr.mxu0 0.0
    %1140 = vmatpush1.msra.mxu0 %v303
    %1141 = vmatprep.subr.mxu0 0.0
    %1142 = vmatpush1.msra.mxu0 %v304
    %1143 = vmatprep.subr.mxu0 0.0
    %1144 = vmatpush1.msra.mxu0 %v305
    %1145 = vmatprep.subr.mxu0 0.0
    %1146 = vmatpush1.msra.mxu0 %v306
    %1147 = vmatprep.subr.mxu0 0.0
    %1148 = vmatpush1.msra.mxu0 %v307
    %1149 = vmatprep.subr.mxu0 0.0
    %1150 = vmatpush1.msra.mxu0 %v308
    %1151 = vmatprep.subr.mxu0 0.0
    %1152 = vmatpush1.msra.mxu0 %v309
    %1153 = vmatprep.subr.mxu0 0.0
    %1154 = vmatpush1.msra.mxu0 %v310
    %1155 = vmatprep.subr.mxu0 0.0
    %1156 = vmatpush1.msra.mxu0 %v311
    %1157 = vmatprep.subr.mxu0 0.0
    %1158 = vmatpush1.msra.mxu0 0.0
    %1159 = vmatprep.subr.mxu0 0.0
    %1160 = vmatpush1.msra.mxu0 0.0
    %1161 = vmatprep.subr.mxu0 0.0
    %1162 = vmatpush1.msra.mxu0 0.0
    %1163 = vmatprep.subr.mxu0 0.0
    %1164 = vmatpush1.msra.mxu0 0.0
    %1165 = vmatprep.subr.mxu0 0.0
    %1166 = vmatpush1.msra.mxu0 0.0
    %1167 = vmatprep.subr.mxu0 0.0
    %1168 = vmatpush1.msra.mxu0 0.0
    %1169 = vmatprep.subr.mxu0 0.0
    %1170 = vmatpush1.msra.mxu0 0.0
    %1171 = vmatprep.subr.mxu0 0.0
    %1172 = vmatpush1.msra.mxu0 0.0
    %1173 = vmatprep.subr.mxu0 0.0
    %1174 = vmatpush1.msra.mxu0 0.0
    %1175 = vmatprep.subr.mxu0 0.0
    %1176 = vmatpush1.msra.mxu0 0.0
    %1177 = vmatprep.subr.mxu0 0.0
    %1178 = vmatpush1.msra.mxu0 0.0
    %1179 = vmatprep.subr.mxu0 0.0
    %1180 = vmatpush1.msra.mxu0 0.0
    %1181 = vmatprep.subr.mxu0 0.0
    %1182 = vmatpush1.msra.mxu0 0.0
    %1183 = vmatprep.subr.mxu0 0.0
    %1184 = vmatpush1.msra.mxu0 0.0
    %1185 = vmatprep.subr.mxu0 0.0
    %1186 = vmatpush1.msra.mxu0 0.0
    %1187 = vmatprep.subr.mxu0 0.0
    %1188 = vmatpush1.msra.mxu0 0.0
    %1189 = vmatprep.mubr.f32.mxu0 0.0
    %1190 = vmatmul.mubr.f32.gmra.mrb[0].mxu0 %v1049
    %v1191 = vpop.f32.mrb[0].mxu0
    %v1192 = vadd.f32 0.0, %v1191
    %v1193 = vpop.f32.mrb[0].mxu0
    %1194 = vdwg.mxu0
    %v1195 = vadd.f32 %v1124, %v1192
    %v1196 = vtanh.pop %v1123
    %v1197 = vtanh.pop %v1195
    %1198 = vst [vmem:[#allocation4 + $0x5] sm:$0x1] %v1196
    %1199 = vst [vmem:[#allocation5 + $0x2] sm:$0x1] %v1197
    %v1200 = vld [vmem:[#allocation2 + $0x6] sm:$0x1]
    %1201 = vmatprep.subr.mxu0 0.0
    %1202 = vmatpush1.msra.mxu0 %v280
    %1203 = vmatprep.subr.mxu0 0.0
    %1204 = vmatpush1.msra.mxu0 %v281
    %1205 = vmatprep.subr.mxu0 0.0
    %1206 = vmatpush1.msra.mxu0 %v282
    %1207 = vmatprep.subr.mxu0 0.0
    %1208 = vmatpush1.msra.mxu0 %v283
    %1209 = vmatprep.subr.mxu0 0.0
    %1210 = vmatpush1.msra.mxu0 %v284
    %1211 = vmatprep.subr.mxu0 0.0
    %1212 = vmatpush1.msra.mxu0 %v285
    %1213 = vmatprep.subr.mxu0 0.0
    %1214 = vmatpush1.msra.mxu0 %v286
    %1215 = vmatprep.subr.mxu0 0.0
    %1216 = vmatpush1.msra.mxu0 %v287
    %1217 = vmatprep.subr.mxu0 0.0
    %1218 = vmatpush1.msra.mxu0 %v288
    %1219 = vmatprep.subr.mxu0 0.0
    %1220 = vmatpush1.msra.mxu0 %v289
    %1221 = vmatprep.subr.mxu0 0.0
    %1222 = vmatpush1.msra.mxu0 %v290
    %1223 = vmatprep.subr.mxu0 0.0
    %1224 = vmatpush1.msra.mxu0 %v291
    %1225 = vmatprep.subr.mxu0 0.0
    %1226 = vmatpush1.msra.mxu0 %v292
    %1227 = vmatprep.subr.mxu0 0.0
    %1228 = vmatpush1.msra.mxu0 %v293
    %1229 = vmatprep.subr.mxu0 0.0
    %1230 = vmatpush1.msra.mxu0 %v294
    %1231 = vmatprep.subr.mxu0 0.0
    %1232 = vmatpush1.msra.mxu0 %v295
    %1233 = vmatprep.subr.mxu0 0.0
    %1234 = vmatpush1.msra.mxu0 0.0
    %1235 = vmatprep.subr.mxu0 0.0
    %1236 = vmatpush1.msra.mxu0 0.0
    %1237 = vmatprep.subr.mxu0 0.0
    %1238 = vmatpush1.msra.mxu0 0.0
    %1239 = vmatprep.subr.mxu0 0.0
    %1240 = vmatpush1.msra.mxu0 0.0
    %1241 = vmatprep.subr.mxu0 0.0
    %1242 = vmatpush1.msra.mxu0 0.0
    %1243 = vmatprep.subr.mxu0 0.0
    %1244 = vmatpush1.msra.mxu0 0.0
    %1245 = vmatprep.subr.mxu0 0.0
    %1246 = vmatpush1.msra.mxu0 0.0
    %1247 = vmatprep.subr.mxu0 0.0
    %1248 = vmatpush1.msra.mxu0 0.0
    %1249 = vmatprep.subr.mxu0 0.0
    %1250 = vmatpush1.msra.mxu0 0.0
    %1251 = vmatprep.subr.mxu0 0.0
    %1252 = vmatpush1.msra.mxu0 0.0
    %1253 = vmatprep.subr.mxu0 0.0
    %1254 = vmatpush1.msra.mxu0 0.0
    %1255 = vmatprep.subr.mxu0 0.0
    %1256 = vmatpush1.msra.mxu0 0.0
    %1257 = vmatprep.subr.mxu0 0.0
    %1258 = vmatpush1.msra.mxu0 0.0
    %1259 = vmatprep.subr.mxu0 0.0
    %1260 = vmatpush1.msra.mxu0 0.0
    %1261 = vmatprep.subr.mxu0 0.0
    %1262 = vmatpush1.msra.mxu0 0.0
    %1263 = vmatprep.subr.mxu0 0.0
    %1264 = vmatpush1.msra.mxu0 0.0
    %1265 = vmatprep.mubr.f32.mxu0 0.0
    %1266 = vmatmul.mubr.f32.gmra.mrb[0].mxu0 %v1196
    %v1267 = vpop.f32.mrb[0].mxu0
    %v1268 = vadd.f32 0.0, %v1267
    %v1269 = vpop.f32.mrb[0].mxu0
    %1270 = vdwg.mxu0
    %v1271 = vadd.f32 %v1200, %v1268
    %v1272 = vld [vmem:[#allocation3 + $0x1] sm:$0x1]
    %1273 = vmatprep.subr.mxu0 0.0
    %1274 = vmatpush1.msra.mxu0 %v296
    %1275 = vmatprep.subr.mxu0 0.0
    %1276 = vmatpush1.msra.mxu0 %v297
    %1277 = vmatprep.subr.mxu0 0.0
    %1278 = vmatpush1.msra.mxu0 %v298
    %1279 = vmatprep.subr.mxu0 0.0
    %1280 = vmatpush1.msra.mxu0 %v299
    %1281 = vmatprep.subr.mxu0 0.0
    %1282 = vmatpush1.msra.mxu0 %v300
    %1283 = vmatprep.subr.mxu0 0.0
    %1284 = vmatpush1.msra.mxu0 %v301
    %1285 = vmatprep.subr.mxu0 0.0
    %1286 = vmatpush1.msra.mxu0 %v302
    %1287 = vmatprep.subr.mxu0 0.0
    %1288 = vmatpush1.msra.mxu0 %v303
    %1289 = vmatprep.subr.mxu0 0.0
    %1290 = vmatpush1.msra.mxu0 %v304
    %1291 = vmatprep.subr.mxu0 0.0
    %1292 = vmatpush1.msra.mxu0 %v305
    %1293 = vmatprep.subr.mxu0 0.0
    %1294 = vmatpush1.msra.mxu0 %v306
    %1295 = vmatprep.subr.mxu0 0.0
    %1296 = vmatpush1.msra.mxu0 %v307
    %1297 = vmatprep.subr.mxu0 0.0
    %1298 = vmatpush1.msra.mxu0 %v308
    %1299 = vmatprep.subr.mxu0 0.0
    %1300 = vmatpush1.msra.mxu0 %v309
    %1301 = vmatprep.subr.mxu0 0.0
    %1302 = vmatpush1.msra.mxu0 %v310
    %1303 = vmatprep.subr.mxu0 0.0
    %1304 = vmatpush1.msra.mxu0 %v311
    %1305 = vmatprep.subr.mxu0 0.0
    %1306 = vmatpush1.msra.mxu0 0.0
    %1307 = vmatprep.subr.mxu0 0.0
    %1308 = vmatpush1.msra.mxu0 0.0
    %1309 = vmatprep.subr.mxu0 0.0
    %1310 = vmatpush1.msra.mxu0 0.0
    %1311 = vmatprep.subr.mxu0 0.0
    %1312 = vmatpush1.msra.mxu0 0.0
    %1313 = vmatprep.subr.mxu0 0.0
    %1314 = vmatpush1.msra.mxu0 0.0
    %1315 = vmatprep.subr.mxu0 0.0
    %1316 = vmatpush1.msra.mxu0 0.0
    %1317 = vmatprep.subr.mxu0 0.0
    %1318 = vmatpush1.msra.mxu0 0.0
    %1319 = vmatprep.subr.mxu0 0.0
    %1320 = vmatpush1.msra.mxu0 0.0
    %1321 = vmatprep.subr.mxu0 0.0
    %1322 = vmatpush1.msra.mxu0 0.0
    %1323 = vmatprep.subr.mxu0 0.0
    %1324 = vmatpush1.msra.mxu0 0.0
    %1325 = vmatprep.subr.mxu0 0.0
    %1326 = vmatpush1.msra.mxu0 0.0
    %1327 = vmatprep.subr.mxu0 0.0
    %1328 = vmatpush1.msra.mxu0 0.0
    %1329 = vmatprep.subr.mxu0 0.0
    %1330 = vmatpush1.msra.mxu0 0.0
    %1331 = vmatprep.subr.mxu0 0.0
    %1332 = vmatpush1.msra.mxu0 0.0
    %1333 = vmatprep.subr.mxu0 0.0
    %1334 = vmatpush1.msra.mxu0 0.0
    %1335 = vmatprep.subr.mxu0 0.0
    %1336 = vmatpush1.msra.mxu0 0.0
    %1337 = vmatprep.mubr.f32.mxu0 0.0
    %1338 = vmatmul.mubr.f32.gmra.mrb[0].mxu0 %v1197
    %v1339 = vpop.f32.mrb[0].mxu0
    %v1340 = vadd.f32 0.0, %v1339
    %v1341 = vpop.f32.mrb[0].mxu0
    %1342 = vdwg.mxu0
    %v1343 = vadd.f32 %v1272, %v1340
    %v1344 = vtanh.pop %v1271
    %v1345 = vtanh.pop %v1343
    %1346 = vst [vmem:[#allocation4 + $0x6] sm:$0x1] %v1344
    %1347 = vst [vmem:[#allocation5 + $0x1] sm:$0x1] %v1345
    %v1348 = vld [vmem:[#allocation2 + $0x7] sm:$0x1]
    %1349 = vmatprep.subr.mxu0 0.0
    %1350 = vmatpush1.msra.mxu0 %v280
    %1351 = vmatprep.subr.mxu0 0.0
    %1352 = vmatpush1.msra.mxu0 %v281
    %1353 = vmatprep.subr.mxu0 0.0
    %1354 = vmatpush1.msra.mxu0 %v282
    %1355 = vmatprep.subr.mxu0 0.0
    %1356 = vmatpush1.msra.mxu0 %v283
    %1357 = vmatprep.subr.mxu0 0.0
    %1358 = vmatpush1.msra.mxu0 %v284
    %1359 = vmatprep.subr.mxu0 0.0
    %1360 = vmatpush1.msra.mxu0 %v285
    %1361 = vmatprep.subr.mxu0 0.0
    %1362 = vmatpush1.msra.mxu0 %v286
    %1363 = vmatprep.subr.mxu0 0.0
    %1364 = vmatpush1.msra.mxu0 %v287
    %1365 = vmatprep.subr.mxu0 0.0
    %1366 = vmatpush1.msra.mxu0 %v288
    %1367 = vmatprep.subr.mxu0 0.0
    %1368 = vmatpush1.msra.mxu0 %v289
    %1369 = vmatprep.subr.mxu0 0.0
    %1370 = vmatpush1.msra.mxu0 %v290
    %1371 = vmatprep.subr.mxu0 0.0
    %1372 = vmatpush1.msra.mxu0 %v291
    %1373 = vmatprep.subr.mxu0 0.0
    %1374 = vmatpush1.msra.mxu0 %v292
    %1375 = vmatprep.subr.mxu0 0.0
    %1376 = vmatpush1.msra.mxu0 %v293
    %1377 = vmatprep.subr.mxu0 0.0
    %1378 = vmatpush1.msra.mxu0 %v294
    %1379 = vmatprep.subr.mxu0 0.0
    %1380 = vmatpush1.msra.mxu0 %v295
    %1381 = vmatprep.subr.mxu0 0.0
    %1382 = vmatpush1.msra.mxu0 0.0
    %1383 = vmatprep.subr.mxu0 0.0
    %1384 = vmatpush1.msra.mxu0 0.0
    %1385 = vmatprep.subr.mxu0 0.0
    %1386 = vmatpush1.msra.mxu0 0.0
    %1387 = vmatprep.subr.mxu0 0.0
    %1388 = vmatpush1.msra.mxu0 0.0
    %1389 = vmatprep.subr.mxu0 0.0
    %1390 = vmatpush1.msra.mxu0 0.0
    %1391 = vmatprep.subr.mxu0 0.0
    %1392 = vmatpush1.msra.mxu0 0.0
    %1393 = vmatprep.subr.mxu0 0.0
    %1394 = vmatpush1.msra.mxu0 0.0
    %1395 = vmatprep.subr.mxu0 0.0
    %1396 = vmatpush1.msra.mxu0 0.0
    %1397 = vmatprep.subr.mxu0 0.0
    %1398 = vmatpush1.msra.mxu0 0.0
    %1399 = vmatprep.subr.mxu0 0.0
    %1400 = vmatpush1.msra.mxu0 0.0
    %1401 = vmatprep.subr.mxu0 0.0
    %1402 = vmatpush1.msra.mxu0 0.0
    %1403 = vmatprep.subr.mxu0 0.0
    %1404 = vmatpush1.msra.mxu0 0.0
    %1405 = vmatprep.subr.mxu0 0.0
    %1406 = vmatpush1.msra.mxu0 0.0
    %1407 = vmatprep.subr.mxu0 0.0
    %1408 = vmatpush1.msra.mxu0 0.0
    %1409 = vmatprep.subr.mxu0 0.0
    %1410 = vmatpush1.msra.mxu0 0.0
    %1411 = vmatprep.subr.mxu0 0.0
    %1412 = vmatpush1.msra.mxu0 0.0
    %1413 = vmatprep.mubr.f32.mxu0 0.0
    %1414 = vmatmul.mubr.f32.gmra.mrb[0].mxu0 %v1344
    %v1415 = vpop.f32.mrb[0].mxu0
    %v1416 = vadd.f32 0.0, %v1415
    %v1417 = vpop.f32.mrb[0].mxu0
    %1418 = vdwg.mxu0
    %v1419 = vadd.f32 %v1348, %v1416
    %v1420 = vld [vmem:[#allocation3] sm:$0x1]
    %1421 = vmatprep.subr.mxu0 0.0
    %1422 = vmatpush1.msra.mxu0 %v296
    %1423 = vmatprep.subr.mxu0 0.0
    %1424 = vmatpush1.msra.mxu0 %v297
    %1425 = vmatprep.subr.mxu0 0.0
    %1426 = vmatpush1.msra.mxu0 %v298
    %1427 = vmatprep.subr.mxu0 0.0
    %1428 = vmatpush1.msra.mxu0 %v299
    %1429 = vmatprep.subr.mxu0 0.0
    %1430 = vmatpush1.msra.mxu0 %v300
    %1431 = vmatprep.subr.mxu0 0.0
    %1432 = vmatpush1.msra.mxu0 %v301
    %1433 = vmatprep.subr.mxu0 0.0
    %1434 = vmatpush1.msra.mxu0 %v302
    %1435 = vmatprep.subr.mxu0 0.0
    %1436 = vmatpush1.msra.mxu0 %v303
    %1437 = vmatprep.subr.mxu0 0.0
    %1438 = vmatpush1.msra.mxu0 %v304
    %1439 = vmatprep.subr.mxu0 0.0
    %1440 = vmatpush1.msra.mxu0 %v305
    %1441 = vmatprep.subr.mxu0 0.0
    %1442 = vmatpush1.msra.mxu0 %v306
    %1443 = vmatprep.subr.mxu0 0.0
    %1444 = vmatpush1.msra.mxu0 %v307
    %1445 = vmatprep.subr.mxu0 0.0
    %1446 = vmatpush1.msra.mxu0 %v308
    %1447 = vmatprep.subr.mxu0 0.0
    %1448 = vmatpush1.msra.mxu0 %v309
    %1449 = vmatprep.subr.mxu0 0.0
    %1450 = vmatpush1.msra.mxu0 %v310
    %1451 = vmatprep.subr.mxu0 0.0
    %1452 = vmatpush1.msra.mxu0 %v311
    %1453 = vmatprep.subr.mxu0 0.0
    %1454 = vmatpush1.msra.mxu0 0.0
    %1455 = vmatprep.subr.mxu0 0.0
    %1456 = vmatpush1.msra.mxu0 0.0
    %1457 = vmatprep.subr.mxu0 0.0
    %1458 = vmatpush1.msra.mxu0 0.0
    %1459 = vmatprep.subr.mxu0 0.0
    %1460 = vmatpush1.msra.mxu0 0.0
    %1461 = vmatprep.subr.mxu0 0.0
    %1462 = vmatpush1.msra.mxu0 0.0
    %1463 = vmatprep.subr.mxu0 0.0
    %1464 = vmatpush1.msra.mxu0 0.0
    %1465 = vmatprep.subr.mxu0 0.0
    %1466 = vmatpush1.msra.mxu0 0.0
    %1467 = vmatprep.subr.mxu0 0.0
    %1468 = vmatpush1.msra.mxu0 0.0
    %1469 = vmatprep.subr.mxu0 0.0
    %1470 = vmatpush1.msra.mxu0 0.0
    %1471 = vmatprep.subr.mxu0 0.0
    %1472 = vmatpush1.msra.mxu0 0.0
    %1473 = vmatprep.subr.mxu0 0.0
    %1474 = vmatpush1.msra.mxu0 0.0
    %1475 = vmatprep.subr.mxu0 0.0
    %1476 = vmatpush1.msra.mxu0 0.0
    %1477 = vmatprep.subr.mxu0 0.0
    %1478 = vmatpush1.msra.mxu0 0.0
    %1479 = vmatprep.subr.mxu0 0.0
    %1480 = vmatpush1.msra.mxu0 0.0
    %1481 = vmatprep.subr.mxu0 0.0
    %1482 = vmatpush1.msra.mxu0 0.0
    %1483 = vmatprep.subr.mxu0 0.0
    %1484 = vmatpush1.msra.mxu0 0.0
    %1485 = vmatprep.mubr.f32.mxu0 0.0
    %1486 = vmatmul.mubr.f32.gmra.mrb[0].mxu0 %v1345
    %v1487 = vpop.f32.mrb[0].mxu0
    %v1488 = vadd.f32 0.0, %v1487
    %v1489 = vpop.f32.mrb[0].mxu0
    %1490 = vdwg.mxu0
    %v1491 = vadd.f32 %v1420, %v1488
    %v1492 = vtanh.pop %v1419
    %v1493 = vtanh.pop %v1491
    %1494 = vst [vmem:[#allocation4 + $0x7] sm:$0x1] %v1492
    %1495 = vst [vmem:[#allocation5] sm:$0x1] %v1493
    %v1496 = vld [vmem:[#allocation4] sm:$0xff]
    %v1497 = vld [vmem:[#allocation13] sm:$0xff]
    %v1498 = vld [vmem:[#allocation13 + $0x8] sm:$0xff]
    %v1499 = vld [vmem:[#allocation13 + $0x10] sm:$0xff]
    %v1500 = vld [vmem:[#allocation13 + $0x18] sm:$0xff]
    %v1501 = vld [vmem:[#allocation13 + $0x20] sm:$0xff]
    %v1502 = vld [vmem:[#allocation13 + $0x28] sm:$0xff]
    %v1503 = vld [vmem:[#allocation13 + $0x30] sm:$0xff]
    %v1504 = vld [vmem:[#allocation13 + $0x38] sm:$0xff]
    %v1505 = vld [vmem:[#allocation13 + $0x40] sm:$0xff]
    %v1506 = vld [vmem:[#allocation13 + $0x48] sm:$0xff]
    %v1507 = vld [vmem:[#allocation13 + $0x50] sm:$0xff]
    %v1508 = vld [vmem:[#allocation13 + $0x58] sm:$0xff]
    %v1509 = vld [vmem:[#allocation13 + $0x60] sm:$0xff]
    %v1510 = vld [vmem:[#allocation13 + $0x68] sm:$0xff]
    %v1511 = vld [vmem:[#allocation13 + $0x70] sm:$0xff]
    %v1512 = vld [vmem:[#allocation13 + $0x78] sm:$0xff]
    %v1513 = vld [vmem:[#allocation5] sm:$0xff]
    %v1514 = vld [vmem:[#allocation14] sm:$0xff]
    %v1515 = vld [vmem:[#allocation14 + $0x8] sm:$0xff]
    %v1516 = vld [vmem:[#allocation14 + $0x10] sm:$0xff]
    %v1517 = vld [vmem:[#allocation14 + $0x18] sm:$0xff]
    %v1518 = vld [vmem:[#allocation14 + $0x20] sm:$0xff]
    %v1519 = vld [vmem:[#allocation14 + $0x28] sm:$0xff]
    %v1520 = vld [vmem:[#allocation14 + $0x30] sm:$0xff]
    %v1521 = vld [vmem:[#allocation14 + $0x38] sm:$0xff]
    %v1522 = vld [vmem:[#allocation14 + $0x40] sm:$0xff]
    %v1523 = vld [vmem:[#allocation14 + $0x48] sm:$0xff]
    %v1524 = vld [vmem:[#allocation14 + $0x50] sm:$0xff]
    %v1525 = vld [vmem:[#allocation14 + $0x58] sm:$0xff]
    %v1526 = vld [vmem:[#allocation14 + $0x60] sm:$0xff]
    %v1527 = vld [vmem:[#allocation14 + $0x68] sm:$0xff]
    %v1528 = vld [vmem:[#allocation14 + $0x70] sm:$0xff]
    %v1529 = vld [vmem:[#allocation14 + $0x78] sm:$0xff]
    %1530 = vmatprep.subr.mxu0 0.0
    %1531 = vmatpush1.msra.mxu0 %v1514
    %1532 = vmatprep.subr.mxu0 0.0
    %1533 = vmatpush1.msra.mxu0 %v1515
    %1534 = vmatprep.subr.mxu0 0.0
    %1535 = vmatpush1.msra.mxu0 %v1516
    %1536 = vmatprep.subr.mxu0 0.0
    %1537 = vmatpush1.msra.mxu0 %v1517
    %1538 = vmatprep.subr.mxu0 0.0
    %1539 = vmatpush1.msra.mxu0 %v1518
    %1540 = vmatprep.subr.mxu0 0.0
    %1541 = vmatpush1.msra.mxu0 %v1519
    %1542 = vmatprep.subr.mxu0 0.0
    %1543 = vmatpush1.msra.mxu0 %v1520
    %1544 = vmatprep.subr.mxu0 0.0
    %1545 = vmatpush1.msra.mxu0 %v1521
    %1546 = vmatprep.subr.mxu0 0.0
    %1547 = vmatpush1.msra.mxu0 %v1522
    %1548 = vmatprep.subr.mxu0 0.0
    %1549 = vmatpush1.msra.mxu0 %v1523
    %1550 = vmatprep.subr.mxu0 0.0
    %1551 = vmatpush1.msra.mxu0 %v1524
    %1552 = vmatprep.subr.mxu0 0.0
    %1553 = vmatpush1.msra.mxu0 %v1525
    %1554 = vmatprep.subr.mxu0 0.0
    %1555 = vmatpush1.msra.mxu0 %v1526
    %1556 = vmatprep.subr.mxu0 0.0
    %1557 = vmatpush1.msra.mxu0 %v1527
    %1558 = vmatprep.subr.mxu0 0.0
    %1559 = vmatpush1.msra.mxu0 %v1528
    %1560 = vmatprep.subr.mxu0 0.0
    %1561 = vmatpush1.msra.mxu0 %v1529
    %1562 = vmatprep.subr.mxu0 0.0
    %1563 = vmatpush1.msra.mxu0 0.0
    %1564 = vmatprep.subr.mxu0 0.0
    %1565 = vmatpush1.msra.mxu0 0.0
    %1566 = vmatprep.subr.mxu0 0.0
    %1567 = vmatpush1.msra.mxu0 0.0
    %1568 = vmatprep.subr.mxu0 0.0
    %1569 = vmatpush1.msra.mxu0 0.0
    %1570 = vmatprep.subr.mxu0 0.0
    %1571 = vmatpush1.msra.mxu0 0.0
    %1572 = vmatprep.subr.mxu0 0.0
    %1573 = vmatpush1.msra.mxu0 0.0
    %1574 = vmatprep.subr.mxu0 0.0
    %1575 = vmatpush1.msra.mxu0 0.0
    %1576 = vmatprep.subr.mxu0 0.0
    %1577 = vmatpush1.msra.mxu0 0.0
    %1578 = vmatprep.subr.mxu0 0.0
    %1579 = vmatpush1.msra.mxu0 0.0
    %1580 = vmatprep.subr.mxu0 0.0
    %1581 = vmatpush1.msra.mxu0 0.0
    %1582 = vmatprep.subr.mxu0 0.0
    %1583 = vmatpush1.msra.mxu0 0.0
    %1584 = vmatprep.subr.mxu0 0.0
    %1585 = vmatpush1.msra.mxu0 0.0
    %1586 = vmatprep.subr.mxu0 0.0
    %1587 = vmatpush1.msra.mxu0 0.0
    %1588 = vmatprep.subr.mxu0 0.0
    %1589 = vmatpush1.msra.mxu0 0.0
    %1590 = vmatprep.subr.mxu0 0.0
    %1591 = vmatpush1.msra.mxu0 0.0
    %1592 = vmatprep.subr.mxu0 0.0
    %1593 = vmatpush1.msra.mxu0 0.0
    %1594 = vmatprep.mubr.f32.mxu0 0.0
    %1595 = vmatmul.mubr.f32.gmra.mrb[0].mxu0 %v1513
    %v1596 = vpop.f32.mrb[0].mxu0
    %v1597 = vadd.f32 0.0, %v1596
    %v1598 = vpop.f32.mrb[0].mxu0
    %1599 = vdwg.mxu0
    %1600 = vmatprep.subr.mxu0 0.0
    %1601 = vmatpush1.msra.mxu0 %v1497
    %1602 = vmatprep.subr.mxu0 0.0
    %1603 = vmatpush1.msra.mxu0 %v1498
    %1604 = vmatprep.subr.mxu0 0.0
    %1605 = vmatpush1.msra.mxu0 %v1499
    %1606 = vmatprep.subr.mxu0 0.0
    %1607 = vmatpush1.msra.mxu0 %v1500
    %1608 = vmatprep.subr.mxu0 0.0
    %1609 = vmatpush1.msra.mxu0 %v1501
    %1610 = vmatprep.subr.mxu0 0.0
    %1611 = vmatpush1.msra.mxu0 %v1502
    %1612 = vmatprep.subr.mxu0 0.0
    %1613 = vmatpush1.msra.mxu0 %v1503
    %1614 = vmatprep.subr.mxu0 0.0
    %1615 = vmatpush1.msra.mxu0 %v1504
    %1616 = vmatprep.subr.mxu0 0.0
    %1617 = vmatpush1.msra.mxu0 %v1505
    %1618 = vmatprep.subr.mxu0 0.0
    %1619 = vmatpush1.msra.mxu0 %v1506
    %1620 = vmatprep.subr.mxu0 0.0
    %1621 = vmatpush1.msra.mxu0 %v1507
    %1622 = vmatprep.subr.mxu0 0.0
    %1623 = vmatpush1.msra.mxu0 %v1508
    %1624 = vmatprep.subr.mxu0 0.0
    %1625 = vmatpush1.msra.mxu0 %v1509
    %1626 = vmatprep.subr.mxu0 0.0
    %1627 = vmatpush1.msra.mxu0 %v1510
    %1628 = vmatprep.subr.mxu0 0.0
    %1629 = vmatpush1.msra.mxu0 %v1511
    %1630 = vmatprep.subr.mxu0 0.0
    %1631 = vmatpush1.msra.mxu0 %v1512
    %1632 = vmatprep.subr.mxu0 0.0
    %1633 = vmatpush1.msra.mxu0 0.0
    %1634 = vmatprep.subr.mxu0 0.0
    %1635 = vmatpush1.msra.mxu0 0.0
    %1636 = vmatprep.subr.mxu0 0.0
    %1637 = vmatpush1.msra.mxu0 0.0
    %1638 = vmatprep.subr.mxu0 0.0
    %1639 = vmatpush1.msra.mxu0 0.0
    %1640 = vmatprep.subr.mxu0 0.0
    %1641 = vmatpush1.msra.mxu0 0.0
    %1642 = vmatprep.subr.mxu0 0.0
    %1643 = vmatpush1.msra.mxu0 0.0
    %1644 = vmatprep.subr.mxu0 0.0
    %1645 = vmatpush1.msra.mxu0 0.0
    %1646 = vmatprep.subr.mxu0 0.0
    %1647 = vmatpush1.msra.mxu0 0.0
    %1648 = vmatprep.subr.mxu0 0.0
    %1649 = vmatpush1.msra.mxu0 0.0
    %1650 = vmatprep.subr.mxu0 0.0
    %1651 = vmatpush1.msra.mxu0 0.0
    %1652 = vmatprep.subr.mxu0 0.0
    %1653 = vmatpush1.msra.mxu0 0.0
    %1654 = vmatprep.subr.mxu0 0.0
    %1655 = vmatpush1.msra.mxu0 0.0
    %1656 = vmatprep.subr.mxu0 0.0
    %1657 = vmatpush1.msra.mxu0 0.0
    %1658 = vmatprep.subr.mxu0 0.0
    %1659 = vmatpush1.msra.mxu0 0.0
    %1660 = vmatprep.subr.mxu0 0.0
    %1661 = vmatpush1.msra.mxu0 0.0
    %1662 = vmatprep.subr.mxu0 0.0
    %1663 = vmatpush1.msra.mxu0 0.0
    %1664 = vmatprep.mubr.f32.mxu0 0.0
    %1665 = vmatmul.mubr.f32.gmra.mrb[0].mxu0 %v1496
    %v1666 = vpop.f32.mrb[0].mxu0
    %v1667 = vadd.f32 %v1597, %v1666
    %v1668 = vpop.f32.mrb[0].mxu0
    %1669 = vdwg.mxu0
    %v1670 = vld [vmem:[%s9] sm:$0x1]
    %v1672 = vlaneseq
    %v1673 = vshrl.u32 %v1672, 7
    %v1674 = vsub.s32 0, %v1673
    %v1675 = vrot.slane %v1670, %v1674
    %v1677 = vadd.f32 %v1667, %v1675
    %1678 = vst [vmem:[%s10] sm:$0xff] %v1677
    // Predicated region
    $region66: #{birnn_forward.1} parent=1 // pred_check
      _
    $region67: #{birnn_forward.1} parent=1 // pred_check_branch
      %1680 = sbr.rel (0) target = $region69
    $region68: #{birnn_forward.1} parent=1 // pred_region
      _
    $region69: #{birnn_forward.1} parent=1 // pred_fallthru
      _
    // Predicated region
    $region70: #{birnn_forward.1} parent=1 // pred_check
      _
    $region71: #{birnn_forward.1} parent=1 // pred_check_branch
      %1682 = sbr.rel (0) target = $region73
    $region72: #{birnn_forward.1} parent=1 // pred_region
      _
    $region73: #{birnn_forward.1} parent=1 // pred_fallthru
      _
    %1683 = vsyncpa [#allocation7], 1
    %1684 = vsyncpa [#allocation9], 1
    %1685 = vsyncpa [#allocation12], 1
    %1686 = vsyncpa [#allocation15], 1

</llo_original>
